<compile_context>
chip_gen: v7x
topology: tpu7x:2x2x1
jax: 0.10.0
libtpu: 0.0.40
codegen_flags: <defaults>
</compile_context>

<pallas_src>
import math
from functools import partial

import jax
import jax.numpy as jnp
from jax.experimental import pallas as pl
from jax.experimental.pallas import tpu as pltpu

LANE = 128  # lane width: feature / node padding target


def _round_up(x, m):
    return ((x + m - 1) // m) * m


def _fpad(in_channels, out_channels):
    return _round_up(max(in_channels, out_channels, 1), LANE)


# -----------------------------------------------------------------------------
# Fused kernel: entire InceptionGCNBlock forward in one body.
# -----------------------------------------------------------------------------
def _make_block_kernel(nlayers):
    """Branch i has (i+1) GCN layers; weights are packed branch-major, so the
    (branch=i, depth=d) weight lives at flat index i*(i+1)//2 + d."""

    def kernel(x_ref, adj_hbm, wb_ref, bb_ref, wf_ref, bf_ref, o_ref,
               adj_vmem, adj_sem):
        # Kick off adj HBM->VMEM DMA; overlap it with all depth-0 X@W matmuls
        # and the input segment of the reduce layer (none of which need adj).
        adj_cp = pltpu.make_async_copy(adj_hbm, adj_vmem, adj_sem)
        adj_cp.start()

        x = x_ref[...]                       # bf16 (n_pad, fpad)
        fpad = x.shape[-1]

        # Reduce-layer support accumulator (f32): input-feature segment.
        fin_acc = jnp.dot(x, wf_ref[0], preferred_element_type=jnp.float32)

        # Depth-0 supports for every branch (branch i, layer j=0).
        sups = [
            jnp.dot(x, wb_ref[i * (i + 1) // 2],
                    preferred_element_type=jnp.float32).astype(jnp.bfloat16)
            for i in range(nlayers)
        ]

        adj_cp.wait()
        adj = adj_vmem[...]                  # bf16 (n_pad, n_pad), reused by all layers

        cur = [None] * nlayers               # per-branch activations, carried as values
        for d in range(nlayers):
            active = list(range(d, nlayers))  # branch i is active while d <= i
            if d > 0:
                sups = [
                    jnp.dot(cur[i], wb_ref[i * (i + 1) // 2 + d],
                            preferred_element_type=jnp.float32).astype(jnp.bfloat16)
                    for i in active
                ]
            # Wavefront: one wide adj matmul for all active branches
            # (adj @ [s_a | s_b] == [adj@s_a | adj@s_b]); stripes are 128-aligned.
            big = sups[0] if len(sups) == 1 else jnp.concatenate(sups, axis=-1)
            agg = jnp.dot(adj, big, preferred_element_type=jnp.float32)
            for k, i in enumerate(active):
                li = i * (i + 1) // 2 + d
                out = agg[:, k * fpad:(k + 1) * fpad] + bb_ref[li:li + 1, :]
                cur[i] = jnp.maximum(out, 0.0).astype(jnp.bfloat16)
            # Branch d just finished: fold its output into the reduce-layer support.
            fin_acc = fin_acc + jnp.dot(cur[d], wf_ref[d + 1],
                                        preferred_element_type=jnp.float32)

        # Final reduce GCN layer: relu(adj @ fin_acc + b_f)
        out = jnp.dot(adj, fin_acc.astype(jnp.bfloat16),
                      preferred_element_type=jnp.float32)
        o_ref[...] = jnp.maximum(out + bf_ref[...], 0.0).astype(o_ref.dtype)

    return kernel


# -----------------------------------------------------------------------------
# Fused block forward (jitted wrapper)
# -----------------------------------------------------------------------------
@partial(jax.jit, static_argnames=("in_channels", "out_channels", "nlayers"))
def inception_gcn_block(x, adj, wb, bb, wf, bf, *,
                        in_channels, out_channels, nlayers):
    N = x.shape[0]
    assert adj.shape == (N, N)
    n_pad = _round_up(max(N, LANE), LANE)      # MXU/lane-friendly node dim
    fpad = _fpad(in_channels, out_channels)    # lane-dense feature dim
    total_layers = nlayers * (nlayers + 1) // 2
    n_seg = nlayers + 1                        # reduce-layer segments: input + branches

    # zero-pad + cast to bf16 once outside the kernel; padded adj COLUMNS are
    # zero so padded node rows provably never leak into real rows.
    x_p = jnp.zeros((n_pad, fpad), jnp.bfloat16).at[:N, :in_channels].set(
        x.astype(jnp.bfloat16))
    adj_p = jnp.zeros((n_pad, n_pad), jnp.bfloat16).at[:N, :N].set(
        adj.astype(jnp.bfloat16))

    # advisory cost estimate for the XLA scheduler
    flops = (2 * n_pad * fpad * fpad * (total_layers + n_seg)
             + 2 * n_pad * n_pad * fpad * (total_layers + 1))
    bytes_accessed = (x_p.size * 2 + adj_p.size * 2 + wb.size * 2 + bb.size * 4
                      + wf.size * 2 + bf.size * 4 + n_pad * fpad * 4)

    # VMEM budget from actual buffer sizes, capped below physical VMEM.
    need = (adj_p.size * 2
            + 2 * (x_p.size * 2 + wb.size * 2 + bb.size * 4
                   + wf.size * 2 + bf.size * 4 + n_pad * fpad * 4)
            + n_pad * fpad * 4 * (nlayers + 4)       # live f32 intermediates
            + (2 << 20))
    try:
        cap = int(pltpu.get_tpu_info().vmem_capacity_bytes * 0.8)
    except Exception:
        cap = 48 * 1024 * 1024
    vmem_limit = int(min(max(need, 16 * 1024 * 1024), cap))

    out_p = pl.pallas_call(
        _make_block_kernel(nlayers),
        out_shape=jax.ShapeDtypeStruct((n_pad, fpad), jnp.float32),
        in_specs=[
            pl.BlockSpec((n_pad, fpad), lambda: (0, 0)),                  # x (bf16)
            pl.BlockSpec(memory_space=pl.ANY),                            # adj (HBM, manual DMA)
            pl.BlockSpec((total_layers, fpad, fpad), lambda: (0, 0, 0)),  # branch W (bf16)
            pl.BlockSpec((total_layers, fpad), lambda: (0, 0)),           # branch b (f32)
            pl.BlockSpec((n_seg, fpad, fpad), lambda: (0, 0, 0)),         # reduce W segments (bf16)
            pl.BlockSpec((1, fpad), lambda: (0, 0)),                      # reduce b (f32)
        ],
        out_specs=pl.BlockSpec((n_pad, fpad), lambda: (0, 0)),
        scratch_shapes=[
            pltpu.VMEM((n_pad, n_pad), jnp.bfloat16),  # adj resident in VMEM
            pltpu.SemaphoreType.DMA,                   # adj DMA completion
        ],
        compiler_params=pltpu.CompilerParams(vmem_limit_bytes=vmem_limit),
        cost_estimate=pl.CostEstimate(flops=flops, transcendentals=0,
                                      bytes_accessed=bytes_accessed),
    )(x_p, adj_p, wb, bb, wf, bf)

    return out_p[:N, :out_channels]


# -----------------------------------------------------------------------------
# Parameter construction (deterministic, mimics GraphConvolutionBS.reset_parameters)
# -----------------------------------------------------------------------------
def init_gcn_params(key, fin, fout):
    stdv = 1.0 / math.sqrt(fout)
    kw, kb = jax.random.split(key)
    w = jax.random.uniform(kw, (fin, fout), jnp.float32, minval=-stdv, maxval=stdv)
    b = jax.random.uniform(kb, (fout,), jnp.float32, minval=-stdv, maxval=stdv)
    return w, b


def init_inception_block_params(key, in_channels, out_channels, nlayers):
    """Branch i has (i+1) GCN layers; plus one final reduce layer."""
    branches = []
    keys = jax.random.split(key, nlayers + 1)
    for i in range(nlayers):
        layer_keys = jax.random.split(keys[i], i + 1)
        layers = []
        for j in range(i + 1):
            fin = in_channels if j == 0 else out_channels
            layers.append(init_gcn_params(layer_keys[j], fin, out_channels))
        branches.append(layers)
    reduce_channels = in_channels + out_channels * nlayers
    final = init_gcn_params(keys[nlayers], reduce_channels, out_channels)
    return branches, final


def pack_params(branches, final, in_channels, out_channels, nlayers):
    """Zero-pad / stack weights (bf16) and biases (f32) into lane-dense slabs."""
    fpad = _fpad(in_channels, out_channels)
    total_layers = sum(len(layers) for layers in branches)
    wb = jnp.zeros((total_layers, fpad, fpad), jnp.bfloat16)
    bb = jnp.zeros((total_layers, fpad), jnp.float32)
    li = 0
    for layers in branches:
        for (w, b) in layers:
            fin = w.shape[0]
            wb = wb.at[li, :fin, :out_channels].set(w.astype(jnp.bfloat16))
            bb = bb.at[li, :out_channels].set(b)
            li += 1
    # reduce layer: split its rows into per-segment (input, branch_0, ...) blocks
    w_f, b_f = final
    n_seg = nlayers + 1
    wf = jnp.zeros((n_seg, fpad, fpad), jnp.bfloat16)
    wf = wf.at[0, :in_channels, :out_channels].set(
        w_f[:in_channels].astype(jnp.bfloat16))
    for i in range(nlayers):
        r0 = in_channels + i * out_channels
        wf = wf.at[i + 1, :out_channels, :out_channels].set(
            w_f[r0:r0 + out_channels].astype(jnp.bfloat16))
    bf = jnp.zeros((1, fpad), jnp.float32).at[0, :out_channels].set(b_f)
    return wb, bb, wf, bf


# -----------------------------------------------------------------------------
if __name__ == "__main__":
    # Small, module-consistent shapes: N nodes, in/out channel widths, 2 branches.
    N = 16
    in_channels = 8
    out_channels = 16
    nlayers = 2

    root = jax.random.PRNGKey(0)
    k_x, k_adj, k_params = jax.random.split(root, 3)

    x = jax.random.normal(k_x, (N, in_channels), dtype=jnp.float32)

    # Symmetric row-normalized dense adjacency (stand-in for the sparse adj).
    a = jax.random.uniform(k_adj, (N, N), dtype=jnp.float32)
    a = (a + a.T) * 0.5 + jnp.eye(N, dtype=jnp.float32)
    adj = a / jnp.sum(a, axis=1, keepdims=True)

    branches, final = init_inception_block_params(
        k_params, in_channels, out_channels, nlayers)
    wb, bb, wf, bf = pack_params(branches, final, in_channels, out_channels, nlayers)

    out = inception_gcn_block(x, adj, wb, bb, wf, bf,
                              in_channels=in_channels,
                              out_channels=out_channels,
                              nlayers=nlayers)
    out = jax.block_until_ready(out)
    assert out.shape == (N, out_channels), out.shape

    # Cross-check against plain-JAX f32 reference of the same math.
    # Kernel runs the matmuls in bf16 (f32 accumulate) -> loosened tolerance.
    def ref_gcn(x_, w_, b_, adj_):
        return jnp.maximum(adj_ @ (x_ @ w_) + b_, 0.0)

    ref = x
    for layers in branches:
        subx = x
        for (w, b) in layers:
            subx = ref_gcn(subx, w, b, adj)
        ref = jnp.concatenate([ref, subx], axis=1)
    ref = ref_gcn(ref, final[0], final[1], adj)
    assert jnp.allclose(out, ref, atol=6e-2, rtol=6e-2), \
        float(jnp.max(jnp.abs(out - ref)))

    print("KERNEL_OK")
</pallas_src>

<mosaic_0001>
module attributes {stable_mosaic.version = 11 : i64} {
  func.func @kernel(%arg0: memref<128x128xbf16, #tpu.memory_space<vmem>>, %arg1: memref<128x128xbf16, #tpu.memory_space<any>>, %arg2: memref<3x128x128xbf16, #tpu.memory_space<vmem>>, %arg3: memref<3x128xf32, #tpu.memory_space<vmem>>, %arg4: memref<3x128x128xbf16, #tpu.memory_space<vmem>>, %arg5: memref<1x128xf32, #tpu.memory_space<vmem>>, %arg6: memref<128x128xf32, #tpu.memory_space<vmem>>, %arg7: memref<128x128xbf16, #tpu.memory_space<vmem>>, %arg8: memref<!tpu.dma_semaphore, #tpu.memory_space<semaphore_mem>>) attributes {dimension_semantics = [], scalar_prefetch = 0 : i64, scratch_operands = 2 : i64, tpu.core_type = #tpu.core_type<tc>} {
    tpu.enqueue_dma source(%arg1 : memref<128x128xbf16, #tpu.memory_space<any>>) target(%arg7 : memref<128x128xbf16, #tpu.memory_space<vmem>>) target_semaphore(%arg8 : memref<!tpu.dma_semaphore, #tpu.memory_space<semaphore_mem>>)
    %c0 = arith.constant 0 : index
    %c0_0 = arith.constant 0 : index
    %0 = vector.load %arg0[%c0, %c0_0] : memref<128x128xbf16, #tpu.memory_space<vmem>>, vector<128x128xbf16>
    %c0_1 = arith.constant 0 : index
    %c0_2 = arith.constant 0 : index
    %c0_3 = arith.constant 0 : index
    %1 = vector.load %arg4[%c0_1, %c0_2, %c0_3] : memref<3x128x128xbf16, #tpu.memory_space<vmem>>, vector<1x128x128xbf16>
    %2 = vector.shape_cast %1 : vector<1x128x128xbf16> to vector<128x128xbf16>
    %cst = arith.constant dense<0.000000e+00> : vector<128x128xf32>
    %3 = tpu.matmul %0, %2, %cst {dimension_numbers = #tpu.dot_dimension_numbers<[1], [0], [0], [1], [0, 0, 1, 1], [], []>} : vector<128x128xbf16>, vector<128x128xbf16>, vector<128x128xf32> -> vector<128x128xf32>
    %c0_4 = arith.constant 0 : index
    %c0_5 = arith.constant 0 : index
    %c0_6 = arith.constant 0 : index
    %4 = vector.load %arg2[%c0_4, %c0_5, %c0_6] : memref<3x128x128xbf16, #tpu.memory_space<vmem>>, vector<1x128x128xbf16>
    %5 = vector.shape_cast %4 : vector<1x128x128xbf16> to vector<128x128xbf16>
    %cst_7 = arith.constant dense<0.000000e+00> : vector<128x128xf32>
    %6 = tpu.matmul %0, %5, %cst_7 {dimension_numbers = #tpu.dot_dimension_numbers<[1], [0], [0], [1], [0, 0, 1, 1], [], []>} : vector<128x128xbf16>, vector<128x128xbf16>, vector<128x128xf32> -> vector<128x128xf32>
    %7 = arith.truncf %6 : vector<128x128xf32> to vector<128x128xbf16>
    %c1 = arith.constant 1 : index
    %c0_8 = arith.constant 0 : index
    %c0_9 = arith.constant 0 : index
    %8 = vector.load %arg2[%c1, %c0_8, %c0_9] : memref<3x128x128xbf16, #tpu.memory_space<vmem>>, vector<1x128x128xbf16>
    %9 = vector.shape_cast %8 : vector<1x128x128xbf16> to vector<128x128xbf16>
    %cst_10 = arith.constant dense<0.000000e+00> : vector<128x128xf32>
    %10 = tpu.matmul %0, %9, %cst_10 {dimension_numbers = #tpu.dot_dimension_numbers<[1], [0], [0], [1], [0, 0, 1, 1], [], []>} : vector<128x128xbf16>, vector<128x128xbf16>, vector<128x128xf32> -> vector<128x128xf32>
    %11 = arith.truncf %10 : vector<128x128xf32> to vector<128x128xbf16>
    tpu.wait_dma2 semaphore(%arg8 : memref<!tpu.dma_semaphore, #tpu.memory_space<semaphore_mem>>) src(%arg1 : memref<128x128xbf16, #tpu.memory_space<any>>) dst(%arg7 : memref<128x128xbf16, #tpu.memory_space<vmem>>)
    %c0_11 = arith.constant 0 : index
    %c0_12 = arith.constant 0 : index
    %12 = vector.load %arg7[%c0_11, %c0_12] : memref<128x128xbf16, #tpu.memory_space<vmem>>, vector<128x128xbf16>
    %13 = tpu.concatenate %7, %11 in 1 : vector<128x128xbf16>, vector<128x128xbf16> -> vector<128x256xbf16>
    %cst_13 = arith.constant dense<0.000000e+00> : vector<128x256xf32>
    %14 = tpu.matmul %12, %13, %cst_13 {dimension_numbers = #tpu.dot_dimension_numbers<[1], [0], [0], [1], [0, 0, 1, 1], [], []>} : vector<128x128xbf16>, vector<128x256xbf16>, vector<128x256xf32> -> vector<128x256xf32>
    %15 = vector.extract_strided_slice %14 {offsets = [0, 0], sizes = [128, 128], strides = [1, 1]} : vector<128x256xf32> to vector<128x128xf32>
    %c0_14 = arith.constant 0 : index
    %c0_15 = arith.constant 0 : index
    %16 = vector.load %arg3[%c0_14, %c0_15] : memref<3x128xf32, #tpu.memory_space<vmem>>, vector<1x128xf32>
    %17 = vector.broadcast %16 : vector<1x128xf32> to vector<128x128xf32>
    %18 = arith.addf %15, %17 : vector<128x128xf32>
    %cst_16 = arith.constant 0.000000e+00 : f32
    %19 = vector.broadcast %cst_16 : f32 to vector<128x128xf32>
    %20 = arith.maximumf %18, %19 : vector<128x128xf32>
    %21 = arith.truncf %20 : vector<128x128xf32> to vector<128x128xbf16>
    %22 = vector.extract_strided_slice %14 {offsets = [0, 128], sizes = [128, 128], strides = [1, 1]} : vector<128x256xf32> to vector<128x128xf32>
    %c1_17 = arith.constant 1 : index
    %c0_18 = arith.constant 0 : index
    %23 = vector.load %arg3[%c1_17, %c0_18] : memref<3x128xf32, #tpu.memory_space<vmem>>, vector<1x128xf32>
    %24 = vector.broadcast %23 : vector<1x128xf32> to vector<128x128xf32>
    %25 = arith.addf %22, %24 : vector<128x128xf32>
    %cst_19 = arith.constant 0.000000e+00 : f32
    %26 = vector.broadcast %cst_19 : f32 to vector<128x128xf32>
    %27 = arith.maximumf %25, %26 : vector<128x128xf32>
    %28 = arith.truncf %27 : vector<128x128xf32> to vector<128x128xbf16>
    %c1_20 = arith.constant 1 : index
    %c0_21 = arith.constant 0 : index
    %c0_22 = arith.constant 0 : index
    %29 = vector.load %arg4[%c1_20, %c0_21, %c0_22] : memref<3x128x128xbf16, #tpu.memory_space<vmem>>, vector<1x128x128xbf16>
    %30 = vector.shape_cast %29 : vector<1x128x128xbf16> to vector<128x128xbf16>
    %cst_23 = arith.constant dense<0.000000e+00> : vector<128x128xf32>
    %31 = tpu.matmul %21, %30, %cst_23 {dimension_numbers = #tpu.dot_dimension_numbers<[1], [0], [0], [1], [0, 0, 1, 1], [], []>} : vector<128x128xbf16>, vector<128x128xbf16>, vector<128x128xf32> -> vector<128x128xf32>
    %32 = arith.addf %3, %31 : vector<128x128xf32>
    %c2 = arith.constant 2 : index
    %c0_24 = arith.constant 0 : index
    %c0_25 = arith.constant 0 : index
    %33 = vector.load %arg2[%c2, %c0_24, %c0_25] : memref<3x128x128xbf16, #tpu.memory_space<vmem>>, vector<1x128x128xbf16>
    %34 = vector.shape_cast %33 : vector<1x128x128xbf16> to vector<128x128xbf16>
    %cst_26 = arith.constant dense<0.000000e+00> : vector<128x128xf32>
    %35 = tpu.matmul %28, %34, %cst_26 {dimension_numbers = #tpu.dot_dimension_numbers<[1], [0], [0], [1], [0, 0, 1, 1], [], []>} : vector<128x128xbf16>, vector<128x128xbf16>, vector<128x128xf32> -> vector<128x128xf32>
    %36 = arith.truncf %35 : vector<128x128xf32> to vector<128x128xbf16>
    %cst_27 = arith.constant dense<0.000000e+00> : vector<128x128xf32>
    %37 = tpu.matmul %12, %36, %cst_27 {dimension_numbers = #tpu.dot_dimension_numbers<[1], [0], [0], [1], [0, 0, 1, 1], [], []>} : vector<128x128xbf16>, vector<128x128xbf16>, vector<128x128xf32> -> vector<128x128xf32>
    %c2_28 = arith.constant 2 : index
    %c0_29 = arith.constant 0 : index
    %38 = vector.load %arg3[%c2_28, %c0_29] : memref<3x128xf32, #tpu.memory_space<vmem>>, vector<1x128xf32>
    %39 = vector.broadcast %38 : vector<1x128xf32> to vector<128x128xf32>
    %40 = arith.addf %37, %39 : vector<128x128xf32>
    %cst_30 = arith.constant 0.000000e+00 : f32
    %41 = vector.broadcast %cst_30 : f32 to vector<128x128xf32>
    %42 = arith.maximumf %40, %41 : vector<128x128xf32>
    %43 = arith.truncf %42 : vector<128x128xf32> to vector<128x128xbf16>
    %c2_31 = arith.constant 2 : index
    %c0_32 = arith.constant 0 : index
    %c0_33 = arith.constant 0 : index
    %44 = vector.load %arg4[%c2_31, %c0_32, %c0_33] : memref<3x128x128xbf16, #tpu.memory_space<vmem>>, vector<1x128x128xbf16>
    %45 = vector.shape_cast %44 : vector<1x128x128xbf16> to vector<128x128xbf16>
    %cst_34 = arith.constant dense<0.000000e+00> : vector<128x128xf32>
    %46 = tpu.matmul %43, %45, %cst_34 {dimension_numbers = #tpu.dot_dimension_numbers<[1], [0], [0], [1], [0, 0, 1, 1], [], []>} : vector<128x128xbf16>, vector<128x128xbf16>, vector<128x128xf32> -> vector<128x128xf32>
    %47 = arith.addf %32, %46 : vector<128x128xf32>
    %48 = arith.truncf %47 : vector<128x128xf32> to vector<128x128xbf16>
    %cst_35 = arith.constant dense<0.000000e+00> : vector<128x128xf32>
    %49 = tpu.matmul %12, %48, %cst_35 {dimension_numbers = #tpu.dot_dimension_numbers<[1], [0], [0], [1], [0, 0, 1, 1], [], []>} : vector<128x128xbf16>, vector<128x128xbf16>, vector<128x128xf32> -> vector<128x128xf32>
    %c0_36 = arith.constant 0 : index
    %c0_37 = arith.constant 0 : index
    %50 = vector.load %arg5[%c0_36, %c0_37] : memref<1x128xf32, #tpu.memory_space<vmem>>, vector<1x128xf32>
    %51 = vector.broadcast %50 : vector<1x128xf32> to vector<128x128xf32>
    %52 = arith.addf %49, %51 : vector<128x128xf32>
    %cst_38 = arith.constant 0.000000e+00 : f32
    %53 = vector.broadcast %cst_38 : f32 to vector<128x128xf32>
    %54 = arith.maximumf %52, %53 : vector<128x128xf32>
    %c0_39 = arith.constant 0 : index
    %c0_40 = arith.constant 0 : index
    %55 = vector.load %arg6[%c0_39, %c0_40] : memref<128x128xf32, #tpu.memory_space<vmem>>, vector<128x128xf32>
    tpu.vector_store %arg6[%c0_39, %c0_40], %54 {strides = array<i32>} : memref<128x128xf32, #tpu.memory_space<vmem>>, vector<128x128xf32>,
    return
  }
}

</mosaic_0001>

<llo_original>
// kernel: inception_gcn_block.1
$region0: #{inception_gcn_block.1}
  #allocation0 [shape = 'u32[]', space=smem, size = 0x4, offset = 0x4, fixed_abs, tag = 'smem constant byte address 0x4 - core index']
  #allocation1 [shape = 'u32[144,128]{1,0:T(1,128)}', space=vmem, size = 0x12000, scoped, tag = 'internal scratch']
  #allocation2 [shape = 'bf16[128,128]{1,0:T(16,128)(2,1)}', space=vmem, size = 0x8000, scoped, tag = 'scratch operand']
  #allocation3 [shape = 's32[1]{0}', space=sflag, size = 0x4, scoped, tag = 'scratch operand']
  #allocation6 [shape = 's32[]', space=sflag, size = 0x4, offset = 0, fixed_abs, tag = 'sflag constant byte address 0x0 - dummy sync flag']
  %s0 = inlined_call_operand.vmem [shape: bf16[128,128], index: 0, kind: input, shape index: {}]
  %s1 = inlined_call_operand.vmem [shape: bf16[128,128], index: 1, kind: input, shape index: {}]
  %s2 = inlined_call_operand.vmem [shape: bf16[3,128,128], index: 2, kind: input, shape index: {}]
  %s3 = inlined_call_operand.vmem [shape: f32[3,128], index: 3, kind: input, shape index: {}]
  %s4 = inlined_call_operand.hbm [shape: bf16[3,128,128], index: 4, kind: input, shape index: {}]
  %s5 = inlined_call_operand.vmem [shape: f32[1,128], index: 5, kind: input, shape index: {}]
  %s6 = inlined_call_operand.vmem [shape: f32[128,128], index: 6, kind: output, shape index: {}]
  %s7 = sld [smem:[#allocation0]]
  $region68: #{inception_gcn_block.1} parent=0
    _
  %s9 = ssub.s32 1, %s7
  %s10 = scalar_select 0, %s9, %s7
  $region1: #{inception_gcn_block.1} parent=0
    #allocation4 [shape = 'u8[98304]{0}', space=vmem, size = 0x18000, scoped, tag = 'input window, operand 4, single buffered']
    #allocation5 [shape = 's32[1]{0}', space=sflag, size = 0x4, scoped, tag = 'scoped memory for inception_gcn_block.1']
    %11 = vsyncpa [#allocation5], 0
    // Predicated region
    $region2: #{inception_gcn_block.1} parent=1 // pred_check
      _
    $region3: #{inception_gcn_block.1} parent=1 // pred_check_branch
      %13 = sbr.rel (0) target = $region5
    $region4: #{inception_gcn_block.1} parent=1 // pred_region
      _
    $region5: #{inception_gcn_block.1} parent=1 // pred_fallthru
      _
    // Predicated region
    $region6: #{inception_gcn_block.1} parent=1 // pred_check
      _
    $region7: #{inception_gcn_block.1} parent=1 // pred_check_branch
      %15 = sbr.rel (0) target = $region9
    $region8: #{inception_gcn_block.1} parent=1 // pred_region
      _
    $region9: #{inception_gcn_block.1} parent=1 // pred_fallthru
      _
    // Predicated region
    $region10: #{inception_gcn_block.1} parent=1 // pred_check
      _
    $region11: #{inception_gcn_block.1} parent=1 // pred_check_branch
      %17 = sbr.rel (0) target = $region13
    $region12: #{inception_gcn_block.1} parent=1 // pred_region
      _
    $region13: #{inception_gcn_block.1} parent=1 // pred_fallthru
      _
    // Predicated region
    $region14: #{inception_gcn_block.1} parent=1 // pred_check
      _
    $region15: #{inception_gcn_block.1} parent=1 // pred_check_branch
      %19 = sbr.rel (0) target = $region17
    $region16: #{inception_gcn_block.1} parent=1 // pred_region
      %s21 = ssub.s32 3072, 3072
      %22 = vsyncadd [#allocation5], %s21
      %s23 = sshll.u32 [#allocation4], 4
      %s24 = int_to_ptr.vmem [resolvable:$true] %s23
      %29 = dma.hbm_to_vmem [thread:$0]  %s4, 3072, %s24, [#allocation5], 64, 64, 4
    $region17: #{inception_gcn_block.1} parent=1 // pred_fallthru
      _
    // Predicated region
    $region18: #{inception_gcn_block.1} parent=1 // pred_check
      _
    $region19: #{inception_gcn_block.1} parent=1 // pred_check_branch
      %31 = sbr.rel (0) target = $region21
    $region20: #{inception_gcn_block.1} parent=1 // pred_region
      _
    $region21: #{inception_gcn_block.1} parent=1 // pred_fallthru
      _
    // Predicated region
    $region22: #{inception_gcn_block.1} parent=1 // pred_check
      _
    $region23: #{inception_gcn_block.1} parent=1 // pred_check_branch
      %33 = sbr.rel (0) target = $region25
    $region24: #{inception_gcn_block.1} parent=1 // pred_region
      %34 = dma.done [#allocation5], 3072
    $region25: #{inception_gcn_block.1} parent=1 // pred_fallthru
      _
    %p37 = scmp.lt.u32.totalorder 64, 8
    %p38 = pneg %p37
    // Predicated region
    $region26: #{inception_gcn_block.1} parent=1 // pred_check
      _
    $region27: #{inception_gcn_block.1} parent=1 // pred_check_branch
      %40 = sbr.rel (%p37) target = $region29
    $region28: #{inception_gcn_block.1} parent=1 // pred_region
      %s55 = sand.u32 64, 7
      %p56 = scmp.eq.s32.totalorder %s55, 0
      // Predicated region
      $region41: #{inception_gcn_block.1} parent=28 // pred_check
        %p57 = pneg %p56
      $region42: #{inception_gcn_block.1} parent=28 // pred_check_branch
        %59 = sbr.rel (%p57) target = $region44
      $region43: #{inception_gcn_block.1} parent=28 // pred_region
        loop: start=0, step=1, limit=1
        $region45: #{inception_gcn_block.1} parent=43 // loop_pre_header
          _
        $region46: #{inception_gcn_block.1} parent=43 // loop_header
          %s61 = sphi 0, %s65
          %p62 = scmp.ge.s32.totalorder %s61, 1
          %s66 = sphi %s1, %s1
          %s67 = sphi [#allocation2], [#allocation2]
        $region47: #{inception_gcn_block.1} parent=43 // loop_header_branch
          %64 = sbr.rel (%p62) target = $region51
        $region48: #{inception_gcn_block.1} parent=43 // loop_body
          %v68 = vld [vmem:[%s66] sm:$0xff]
          %69 = vst [vmem:[%s67] sm:$0xff] %v68
          %v70 = vld [vmem:[%s66 + $0x8] sm:$0xff]
          %71 = vst [vmem:[%s67 + $0x8] sm:$0xff] %v70
          %v72 = vld [vmem:[%s66 + $0x10] sm:$0xff]
          %73 = vst [vmem:[%s67 + $0x10] sm:$0xff] %v72
          %v74 = vld [vmem:[%s66 + $0x18] sm:$0xff]
          %75 = vst [vmem:[%s67 + $0x18] sm:$0xff] %v74
          %v76 = vld [vmem:[%s66 + $0x20] sm:$0xff]
          %77 = vst [vmem:[%s67 + $0x20] sm:$0xff] %v76
          %v78 = vld [vmem:[%s66 + $0x28] sm:$0xff]
          %79 = vst [vmem:[%s67 + $0x28] sm:$0xff] %v78
          %v80 = vld [vmem:[%s66 + $0x30] sm:$0xff]
          %81 = vst [vmem:[%s67 + $0x30] sm:$0xff] %v80
          %v82 = vld [vmem:[%s66 + $0x38] sm:$0xff]
          %83 = vst [vmem:[%s67 + $0x38] sm:$0xff] %v82
        $region49: #{inception_gcn_block.1} parent=43 // loop_footer
          %s65 = sadd.s32 1, %s61
        $region50: #{inception_gcn_block.1} parent=43 // loop_footer_branch
          %60 = sbr.rel target = $region46
        $region51: #{inception_gcn_block.1} parent=43 // loop_exit
          _
      $region44: #{inception_gcn_block.1} parent=28 // pred_fallthru
        _
      %p84 = pneg %p56
      // Predicated region
      $region52: #{inception_gcn_block.1} parent=28 // pred_check
        _
      $region53: #{inception_gcn_block.1} parent=28 // pred_check_branch
        %86 = sbr.rel (%p56) target = $region55
      $region54: #{inception_gcn_block.1} parent=28 // pred_region
        %s87 = sand.u32 64, 7
      $region55: #{inception_gcn_block.1} parent=28 // pred_fallthru
        _
    $region29: #{inception_gcn_block.1} parent=1 // pred_fallthru
      _
    // Predicated region
    $region30: #{inception_gcn_block.1} parent=1 // pred_check
      %p41 = pneg %p37
    $region31: #{inception_gcn_block.1} parent=1 // pred_check_branch
      %43 = sbr.rel (%p41) target = $region33
    $region32: #{inception_gcn_block.1} parent=1 // pred_region
      %s44 = sshllo.u32 0, 64
      loop: start=0, step=1, limit=1
      $region34: #{inception_gcn_block.1} parent=32 // loop_pre_header
        _
      $region35: #{inception_gcn_block.1} parent=32 // loop_header
        %s46 = sphi 0, %s50
        %p47 = scmp.ge.s32.totalorder %s46, 1
        %s51 = sphi %s1, %s1
        %s52 = sphi [#allocation2], [#allocation2]
      $region36: #{inception_gcn_block.1} parent=32 // loop_header_branch
        %49 = sbr.rel (%p47) target = $region40
      $region37: #{inception_gcn_block.1} parent=32 // loop_body
        %v53 = vld [vmem:[%s51] sm:%s44]
        %54 = vst [vmem:[%s52] sm:%s44] %v53
      $region38: #{inception_gcn_block.1} parent=32 // loop_footer
        %s50 = sadd.s32 1, %s46
      $region39: #{inception_gcn_block.1} parent=32 // loop_footer_branch
        %45 = sbr.rel target = $region35
      $region40: #{inception_gcn_block.1} parent=32 // loop_exit
        _
    $region33: #{inception_gcn_block.1} parent=1 // pred_fallthru
      _
    // Predicated region
    $region56: #{inception_gcn_block.1} parent=1 // pred_check
      _
    $region57: #{inception_gcn_block.1} parent=1 // pred_check_branch
      %90 = sbr.rel (0) target = $region59
    $region58: #{inception_gcn_block.1} parent=1 // pred_region
      %91 = vsyncadd [#allocation3], 1024
    $region59: #{inception_gcn_block.1} parent=1 // pred_fallthru
      _
    %v92 = vld [vmem:[%s0] sm:$0xf]
    %v93 = vld [vmem:[%s0 + $0x4] sm:$0xf]
    %v94 = vld [vmem:[%s0 + $0x8] sm:$0xf]
    %v95 = vld [vmem:[%s0 + $0xc] sm:$0xf]
    %v96 = vld [vmem:[%s0 + $0x10] sm:$0xf]
    %v97 = vld [vmem:[%s0 + $0x14] sm:$0xf]
    %v98 = vld [vmem:[%s0 + $0x18] sm:$0xf]
    %v99 = vld [vmem:[%s0 + $0x1c] sm:$0xf]
    %v100 = vld [vmem:[%s0 + $0x20] sm:$0xf]
    %v101 = vld [vmem:[%s0 + $0x24] sm:$0xf]
    %v102 = vld [vmem:[%s0 + $0x28] sm:$0xf]
    %v103 = vld [vmem:[%s0 + $0x2c] sm:$0xf]
    %v104 = vld [vmem:[%s0 + $0x30] sm:$0xf]
    %v105 = vld [vmem:[%s0 + $0x34] sm:$0xf]
    %v106 = vld [vmem:[%s0 + $0x38] sm:$0xf]
    %v107 = vld [vmem:[%s0 + $0x3c] sm:$0xf]
    %v108 = vld [vmem:[#allocation4] sm:$0xf]
    %v109 = vld [vmem:[#allocation4 + $0x4] sm:$0xf]
    %v110 = vld [vmem:[#allocation4 + $0x8] sm:$0xf]
    %v111 = vld [vmem:[#allocation4 + $0xc] sm:$0xf]
    %v112 = vld [vmem:[#allocation4 + $0x10] sm:$0xf]
    %v113 = vld [vmem:[#allocation4 + $0x14] sm:$0xf]
    %v114 = vld [vmem:[#allocation4 + $0x18] sm:$0xf]
    %v115 = vld [vmem:[#allocation4 + $0x1c] sm:$0xf]
    %v116 = vld [vmem:[#allocation4 + $0x20] sm:$0xf]
    %v117 = vld [vmem:[#allocation4 + $0x24] sm:$0xf]
    %v118 = vld [vmem:[#allocation4 + $0x28] sm:$0xf]
    %v119 = vld [vmem:[#allocation4 + $0x2c] sm:$0xf]
    %v120 = vld [vmem:[#allocation4 + $0x30] sm:$0xf]
    %v121 = vld [vmem:[#allocation4 + $0x34] sm:$0xf]
    %v122 = vld [vmem:[#allocation4 + $0x38] sm:$0xf]
    %v123 = vld [vmem:[#allocation4 + $0x3c] sm:$0xf]
    %v124 = vld [vmem:[%s2] sm:$0xf]
    %v125 = vld [vmem:[%s2 + $0x4] sm:$0xf]
    %v126 = vld [vmem:[%s2 + $0x8] sm:$0xf]
    %v127 = vld [vmem:[%s2 + $0xc] sm:$0xf]
    %v128 = vld [vmem:[%s2 + $0x10] sm:$0xf]
    %v129 = vld [vmem:[%s2 + $0x14] sm:$0xf]
    %v130 = vld [vmem:[%s2 + $0x18] sm:$0xf]
    %v131 = vld [vmem:[%s2 + $0x1c] sm:$0xf]
    %v132 = vld [vmem:[%s2 + $0x20] sm:$0xf]
    %v133 = vld [vmem:[%s2 + $0x24] sm:$0xf]
    %v134 = vld [vmem:[%s2 + $0x28] sm:$0xf]
    %v135 = vld [vmem:[%s2 + $0x2c] sm:$0xf]
    %v136 = vld [vmem:[%s2 + $0x30] sm:$0xf]
    %v137 = vld [vmem:[%s2 + $0x34] sm:$0xf]
    %v138 = vld [vmem:[%s2 + $0x38] sm:$0xf]
    %v139 = vld [vmem:[%s2 + $0x3c] sm:$0xf]
    %v156 = vunpack.c.l.b16 %v92
    %v157 = vunpack.c.l.b16 %v93
    %v158 = vunpack.c.l.b16 %v94
    %v159 = vunpack.c.l.b16 %v95
    %v160 = vunpack.c.l.b16 %v96
    %v161 = vunpack.c.l.b16 %v97
    %v162 = vunpack.c.l.b16 %v98
    %v163 = vunpack.c.l.b16 %v99
    %v164 = vunpack.c.l.b16 %v100
    %v165 = vunpack.c.l.b16 %v101
    %v166 = vunpack.c.l.b16 %v102
    %v167 = vunpack.c.l.b16 %v103
    %v168 = vunpack.c.l.b16 %v104
    %v169 = vunpack.c.l.b16 %v105
    %v170 = vunpack.c.l.b16 %v106
    %v171 = vunpack.c.l.b16 %v107
    %v172 = vpack.c.b16 %v157, %v156
    %v173 = vpack.c.b16 %v159, %v158
    %v174 = vpack.c.b16 %v161, %v160
    %v175 = vpack.c.b16 %v163, %v162
    %v176 = vpack.c.b16 %v165, %v164
    %v177 = vpack.c.b16 %v167, %v166
    %v178 = vpack.c.b16 %v169, %v168
    %v179 = vpack.c.b16 %v171, %v170
    %v204 = vunpack.c.l.b16 %v124
    %v205 = vunpack.c.l.b16 %v125
    %v206 = vunpack.c.l.b16 %v126
    %v207 = vunpack.c.l.b16 %v127
    %v208 = vunpack.c.l.b16 %v128
    %v209 = vunpack.c.l.b16 %v129
    %v210 = vunpack.c.l.b16 %v130
    %v211 = vunpack.c.l.b16 %v131
    %v212 = vunpack.c.l.b16 %v132
    %v213 = vunpack.c.l.b16 %v133
    %v214 = vunpack.c.l.b16 %v134
    %v215 = vunpack.c.l.b16 %v135
    %v216 = vunpack.c.l.b16 %v136
    %v217 = vunpack.c.l.b16 %v137
    %v218 = vunpack.c.l.b16 %v138
    %v219 = vunpack.c.l.b16 %v139
    %v220 = vpack.c.b16 %v205, %v204
    %v221 = vpack.c.b16 %v207, %v206
    %v222 = vpack.c.b16 %v209, %v208
    %v223 = vpack.c.b16 %v211, %v210
    %v224 = vpack.c.b16 %v213, %v212
    %v225 = vpack.c.b16 %v215, %v214
    %v226 = vpack.c.b16 %v217, %v216
    %v227 = vpack.c.b16 %v219, %v218
    %236 = vmatprep.subr.bf16.mxu0 0
    %237 = vmatpush1.bf16.msra.mxu0 %v220
    %238 = vmatprep.subr.bf16.mxu0 0
    %239 = vmatpush1.bf16.msra.mxu0 %v221
    %240 = vmatprep.subr.bf16.mxu0 0
    %241 = vmatpush1.bf16.msra.mxu0 %v222
    %242 = vmatprep.subr.bf16.mxu0 0
    %243 = vmatpush1.bf16.msra.mxu0 %v223
    %244 = vmatprep.subr.bf16.mxu0 0
    %245 = vmatpush1.bf16.msra.mxu0 %v224
    %246 = vmatprep.subr.bf16.mxu0 0
    %247 = vmatpush1.bf16.msra.mxu0 %v225
    %248 = vmatprep.subr.bf16.mxu0 0
    %249 = vmatpush1.bf16.msra.mxu0 %v226
    %250 = vmatprep.subr.bf16.mxu0 0
    %251 = vmatpush1.bf16.msra.mxu0 %v227
    %252 = vmatprep.subr.bf16.mxu0 0
    %253 = vmatpush1.bf16.msra.mxu0 0
    %254 = vmatprep.subr.bf16.mxu0 0
    %255 = vmatpush1.bf16.msra.mxu0 0
    %256 = vmatprep.subr.bf16.mxu0 0
    %257 = vmatpush1.bf16.msra.mxu0 0
    %258 = vmatprep.subr.bf16.mxu0 0
    %259 = vmatpush1.bf16.msra.mxu0 0
    %260 = vmatprep.subr.bf16.mxu0 0
    %261 = vmatpush1.bf16.msra.mxu0 0
    %262 = vmatprep.subr.bf16.mxu0 0
    %263 = vmatpush1.bf16.msra.mxu0 0
    %264 = vmatprep.subr.bf16.mxu0 0
    %265 = vmatpush1.bf16.msra.mxu0 0
    %266 = vmatprep.subr.bf16.mxu0 0
    %267 = vmatpush1.bf16.msra.mxu0 0
    %268 = vmatprep.mubr.bf16.mxu0 0
    %269 = vmatmul.mubr.bf16.gmra.mrb[0].mxu0 %v172
    %v270 = vpop.f32.mrb[0].mxu0
    %v271 = vadd.f32 0.0, %v270
    %v272 = vpop.f32.mrb[0].mxu0
    %v273 = vpop.f32.mrb[0].mxu0
    %v274 = vadd.f32 0.0, %v273
    %v275 = vpop.f32.mrb[0].mxu0
    %276 = vmatprep.mubr.bf16.mxu0 0
    %277 = vmatmul.mubr.bf16.gmra.mrb[0].mxu0 %v173
    %v278 = vpop.f32.mrb[0].mxu0
    %v279 = vadd.f32 0.0, %v278
    %v280 = vpop.f32.mrb[0].mxu0
    %v281 = vpop.f32.mrb[0].mxu0
    %v282 = vadd.f32 0.0, %v281
    %v283 = vpop.f32.mrb[0].mxu0
    %284 = vmatprep.mubr.bf16.mxu0 0
    %285 = vmatmul.mubr.bf16.gmra.mrb[0].mxu0 %v174
    %v286 = vpop.f32.mrb[0].mxu0
    %v287 = vadd.f32 0.0, %v286
    %v288 = vpop.f32.mrb[0].mxu0
    %v289 = vpop.f32.mrb[0].mxu0
    %v290 = vadd.f32 0.0, %v289
    %v291 = vpop.f32.mrb[0].mxu0
    %292 = vmatprep.mubr.bf16.mxu0 0
    %293 = vmatmul.mubr.bf16.gmra.mrb[0].mxu0 %v175
    %v294 = vpop.f32.mrb[0].mxu0
    %v295 = vadd.f32 0.0, %v294
    %v296 = vpop.f32.mrb[0].mxu0
    %v297 = vpop.f32.mrb[0].mxu0
    %v298 = vadd.f32 0.0, %v297
    %v299 = vpop.f32.mrb[0].mxu0
    %300 = vmatprep.mubr.bf16.mxu0 0
    %301 = vmatmul.mubr.bf16.gmra.mrb[0].mxu0 %v176
    %v302 = vpop.f32.mrb[0].mxu0
    %v303 = vadd.f32 0.0, %v302
    %v304 = vpop.f32.mrb[0].mxu0
    %v305 = vpop.f32.mrb[0].mxu0
    %v306 = vadd.f32 0.0, %v305
    %v307 = vpop.f32.mrb[0].mxu0
    %308 = vmatprep.mubr.bf16.mxu0 0
    %309 = vmatmul.mubr.bf16.gmra.mrb[0].mxu0 %v177
    %v310 = vpop.f32.mrb[0].mxu0
    %v311 = vadd.f32 0.0, %v310
    %v312 = vpop.f32.mrb[0].mxu0
    %v313 = vpop.f32.mrb[0].mxu0
    %v314 = vadd.f32 0.0, %v313
    %v315 = vpop.f32.mrb[0].mxu0
    %316 = vmatprep.mubr.bf16.mxu0 0
    %317 = vmatmul.mubr.bf16.gmra.mrb[0].mxu0 %v178
    %v318 = vpop.f32.mrb[0].mxu0
    %v319 = vadd.f32 0.0, %v318
    %v320 = vpop.f32.mrb[0].mxu0
    %v321 = vpop.f32.mrb[0].mxu0
    %v322 = vadd.f32 0.0, %v321
    %v323 = vpop.f32.mrb[0].mxu0
    %324 = vmatprep.mubr.bf16.mxu0 0
    %325 = vmatmul.mubr.bf16.gmra.mrb[0].mxu0 %v179
    %v326 = vpop.f32.mrb[0].mxu0
    %v327 = vadd.f32 0.0, %v326
    %v328 = vpop.f32.mrb[0].mxu0
    %v329 = vpop.f32.mrb[0].mxu0
    %v330 = vadd.f32 0.0, %v329
    %v331 = vpop.f32.mrb[0].mxu0
    %332 = vdwg.mxu0
    %v333 = vpack.c.bf16 %v274, %v271
    %v334 = vpack.c.bf16 %v282, %v279
    %v335 = vpack.c.bf16 %v290, %v287
    %v336 = vpack.c.bf16 %v298, %v295
    %v337 = vpack.c.bf16 %v306, %v303
    %v338 = vpack.c.bf16 %v314, %v311
    %v339 = vpack.c.bf16 %v322, %v319
    %v340 = vpack.c.bf16 %v330, %v327
    %s341 = scalar_lea.vmem %s2, 64
    %v342 = vld [vmem:[%s341] sm:$0xf]
    %v343 = vld [vmem:[%s341 + $0x4] sm:$0xf]
    %v344 = vld [vmem:[%s341 + $0x8] sm:$0xf]
    %v345 = vld [vmem:[%s341 + $0xc] sm:$0xf]
    %v346 = vld [vmem:[%s341 + $0x10] sm:$0xf]
    %v347 = vld [vmem:[%s341 + $0x14] sm:$0xf]
    %v348 = vld [vmem:[%s341 + $0x18] sm:$0xf]
    %v349 = vld [vmem:[%s341 + $0x1c] sm:$0xf]
    %v350 = vld [vmem:[%s341 + $0x20] sm:$0xf]
    %v351 = vld [vmem:[%s341 + $0x24] sm:$0xf]
    %v352 = vld [vmem:[%s341 + $0x28] sm:$0xf]
    %v353 = vld [vmem:[%s341 + $0x2c] sm:$0xf]
    %v354 = vld [vmem:[%s341 + $0x30] sm:$0xf]
    %v355 = vld [vmem:[%s341 + $0x34] sm:$0xf]
    %v356 = vld [vmem:[%s341 + $0x38] sm:$0xf]
    %v357 = vld [vmem:[%s341 + $0x3c] sm:$0xf]
    %v374 = vunpack.c.l.b16 %v342
    %v375 = vunpack.c.l.b16 %v343
    %v376 = vunpack.c.l.b16 %v344
    %v377 = vunpack.c.l.b16 %v345
    %v378 = vunpack.c.l.b16 %v346
    %v379 = vunpack.c.l.b16 %v347
    %v380 = vunpack.c.l.b16 %v348
    %v381 = vunpack.c.l.b16 %v349
    %v382 = vunpack.c.l.b16 %v350
    %v383 = vunpack.c.l.b16 %v351
    %v384 = vunpack.c.l.b16 %v352
    %v385 = vunpack.c.l.b16 %v353
    %v386 = vunpack.c.l.b16 %v354
    %v387 = vunpack.c.l.b16 %v355
    %v388 = vunpack.c.l.b16 %v356
    %v389 = vunpack.c.l.b16 %v357
    %v390 = vpack.c.b16 %v375, %v374
    %v391 = vpack.c.b16 %v377, %v376
    %v392 = vpack.c.b16 %v379, %v378
    %v393 = vpack.c.b16 %v381, %v380
    %v394 = vpack.c.b16 %v383, %v382
    %v395 = vpack.c.b16 %v385, %v384
    %v396 = vpack.c.b16 %v387, %v386
    %v397 = vpack.c.b16 %v389, %v388
    %406 = vmatprep.subr.bf16.mxu0 0
    %407 = vmatpush1.bf16.msra.mxu0 %v390
    %408 = vmatprep.subr.bf16.mxu0 0
    %409 = vmatpush1.bf16.msra.mxu0 %v391
    %410 = vmatprep.subr.bf16.mxu0 0
    %411 = vmatpush1.bf16.msra.mxu0 %v392
    %412 = vmatprep.subr.bf16.mxu0 0
    %413 = vmatpush1.bf16.msra.mxu0 %v393
    %414 = vmatprep.subr.bf16.mxu0 0
    %415 = vmatpush1.bf16.msra.mxu0 %v394
    %416 = vmatprep.subr.bf16.mxu0 0
    %417 = vmatpush1.bf16.msra.mxu0 %v395
    %418 = vmatprep.subr.bf16.mxu0 0
    %419 = vmatpush1.bf16.msra.mxu0 %v396
    %420 = vmatprep.subr.bf16.mxu0 0
    %421 = vmatpush1.bf16.msra.mxu0 %v397
    %422 = vmatprep.subr.bf16.mxu0 0
    %423 = vmatpush1.bf16.msra.mxu0 0
    %424 = vmatprep.subr.bf16.mxu0 0
    %425 = vmatpush1.bf16.msra.mxu0 0
    %426 = vmatprep.subr.bf16.mxu0 0
    %427 = vmatpush1.bf16.msra.mxu0 0
    %428 = vmatprep.subr.bf16.mxu0 0
    %429 = vmatpush1.bf16.msra.mxu0 0
    %430 = vmatprep.subr.bf16.mxu0 0
    %431 = vmatpush1.bf16.msra.mxu0 0
    %432 = vmatprep.subr.bf16.mxu0 0
    %433 = vmatpush1.bf16.msra.mxu0 0
    %434 = vmatprep.subr.bf16.mxu0 0
    %435 = vmatpush1.bf16.msra.mxu0 0
    %436 = vmatprep.subr.bf16.mxu0 0
    %437 = vmatpush1.bf16.msra.mxu0 0
    %438 = vmatprep.mubr.bf16.mxu0 0
    %439 = vmatmul.mubr.bf16.gmra.mrb[0].mxu0 %v172
    %v440 = vpop.f32.mrb[0].mxu0
    %v441 = vadd.f32 0.0, %v440
    %v442 = vpop.f32.mrb[0].mxu0
    %v443 = vpop.f32.mrb[0].mxu0
    %v444 = vadd.f32 0.0, %v443
    %v445 = vpop.f32.mrb[0].mxu0
    %446 = vmatprep.mubr.bf16.mxu0 0
    %447 = vmatmul.mubr.bf16.gmra.mrb[0].mxu0 %v173
    %v448 = vpop.f32.mrb[0].mxu0
    %v449 = vadd.f32 0.0, %v448
    %v450 = vpop.f32.mrb[0].mxu0
    %v451 = vpop.f32.mrb[0].mxu0
    %v452 = vadd.f32 0.0, %v451
    %v453 = vpop.f32.mrb[0].mxu0
    %454 = vmatprep.mubr.bf16.mxu0 0
    %455 = vmatmul.mubr.bf16.gmra.mrb[0].mxu0 %v174
    %v456 = vpop.f32.mrb[0].mxu0
    %v457 = vadd.f32 0.0, %v456
    %v458 = vpop.f32.mrb[0].mxu0
    %v459 = vpop.f32.mrb[0].mxu0
    %v460 = vadd.f32 0.0, %v459
    %v461 = vpop.f32.mrb[0].mxu0
    %462 = vmatprep.mubr.bf16.mxu0 0
    %463 = vmatmul.mubr.bf16.gmra.mrb[0].mxu0 %v175
    %v464 = vpop.f32.mrb[0].mxu0
    %v465 = vadd.f32 0.0, %v464
    %v466 = vpop.f32.mrb[0].mxu0
    %v467 = vpop.f32.mrb[0].mxu0
    %v468 = vadd.f32 0.0, %v467
    %v469 = vpop.f32.mrb[0].mxu0
    %470 = vmatprep.mubr.bf16.mxu0 0
    %471 = vmatmul.mubr.bf16.gmra.mrb[0].mxu0 %v176
    %v472 = vpop.f32.mrb[0].mxu0
    %v473 = vadd.f32 0.0, %v472
    %v474 = vpop.f32.mrb[0].mxu0
    %v475 = vpop.f32.mrb[0].mxu0
    %v476 = vadd.f32 0.0, %v475
    %v477 = vpop.f32.mrb[0].mxu0
    %478 = vmatprep.mubr.bf16.mxu0 0
    %479 = vmatmul.mubr.bf16.gmra.mrb[0].mxu0 %v177
    %v480 = vpop.f32.mrb[0].mxu0
    %v481 = vadd.f32 0.0, %v480
    %v482 = vpop.f32.mrb[0].mxu0
    %v483 = vpop.f32.mrb[0].mxu0
    %v484 = vadd.f32 0.0, %v483
    %v485 = vpop.f32.mrb[0].mxu0
    %486 = vmatprep.mubr.bf16.mxu0 0
    %487 = vmatmul.mubr.bf16.gmra.mrb[0].mxu0 %v178
    %v488 = vpop.f32.mrb[0].mxu0
    %v489 = vadd.f32 0.0, %v488
    %v490 = vpop.f32.mrb[0].mxu0
    %v491 = vpop.f32.mrb[0].mxu0
    %v492 = vadd.f32 0.0, %v491
    %v493 = vpop.f32.mrb[0].mxu0
    %494 = vmatprep.mubr.bf16.mxu0 0
    %495 = vmatmul.mubr.bf16.gmra.mrb[0].mxu0 %v179
    %v496 = vpop.f32.mrb[0].mxu0
    %v497 = vadd.f32 0.0, %v496
    %v498 = vpop.f32.mrb[0].mxu0
    %v499 = vpop.f32.mrb[0].mxu0
    %v500 = vadd.f32 0.0, %v499
    %v501 = vpop.f32.mrb[0].mxu0
    %502 = vdwg.mxu0
    %v503 = vpack.c.bf16 %v444, %v441
    %v504 = vpack.c.bf16 %v452, %v449
    %v505 = vpack.c.bf16 %v460, %v457
    %v506 = vpack.c.bf16 %v468, %v465
    %v507 = vpack.c.bf16 %v476, %v473
    %v508 = vpack.c.bf16 %v484, %v481
    %v509 = vpack.c.bf16 %v492, %v489
    %v510 = vpack.c.bf16 %v500, %v497
    %s511 = smul.u32 4, 16
    %s512 = smul.u32 %s511, 1
    %s513 = sshll.u32 %s512, 4
    %514 = dma.done [#allocation3], %s513
    %v515 = vld [vmem:[#allocation2] sm:$0xff]
    %v516 = vld [vmem:[#allocation2 + $0x8] sm:$0xff]
    %v517 = vld [vmem:[#allocation2 + $0x10] sm:$0xff]
    %v518 = vld [vmem:[#allocation2 + $0x18] sm:$0xff]
    %v519 = vld [vmem:[#allocation2 + $0x20] sm:$0xff]
    %v520 = vld [vmem:[#allocation2 + $0x28] sm:$0xff]
    %v521 = vld [vmem:[#allocation2 + $0x30] sm:$0xff]
    %v522 = vld [vmem:[#allocation2 + $0x38] sm:$0xff]
    %523 = vmatprep.subr.bf16.mxu0 %v503
    %524 = vmatpush1.bf16.msra.mxu0 %v333
    %525 = vmatprep.subr.bf16.mxu0 %v504
    %526 = vmatpush1.bf16.msra.mxu0 %v334
    %527 = vmatprep.subr.bf16.mxu0 %v505
    %528 = vmatpush1.bf16.msra.mxu0 %v335
    %529 = vmatprep.subr.bf16.mxu0 %v506
    %530 = vmatpush1.bf16.msra.mxu0 %v336
    %531 = vmatprep.subr.bf16.mxu0 %v507
    %532 = vmatpush1.bf16.msra.mxu0 %v337
    %533 = vmatprep.subr.bf16.mxu0 %v508
    %534 = vmatpush1.bf16.msra.mxu0 %v338
    %535 = vmatprep.subr.bf16.mxu0 %v509
    %536 = vmatpush1.bf16.msra.mxu0 %v339
    %537 = vmatprep.subr.bf16.mxu0 %v510
    %538 = vmatpush1.bf16.msra.mxu0 %v340
    %539 = vmatprep.subr.bf16.mxu0 0
    %540 = vmatpush1.bf16.msra.mxu0 0
    %541 = vmatprep.subr.bf16.mxu0 0
    %542 = vmatpush1.bf16.msra.mxu0 0
    %543 = vmatprep.subr.bf16.mxu0 0
    %544 = vmatpush1.bf16.msra.mxu0 0
    %545 = vmatprep.subr.bf16.mxu0 0
    %546 = vmatpush1.bf16.msra.mxu0 0
    %547 = vmatprep.subr.bf16.mxu0 0
    %548 = vmatpush1.bf16.msra.mxu0 0
    %549 = vmatprep.subr.bf16.mxu0 0
    %550 = vmatpush1.bf16.msra.mxu0 0
    %551 = vmatprep.subr.bf16.mxu0 0
    %552 = vmatpush1.bf16.msra.mxu0 0
    %553 = vmatprep.subr.bf16.mxu0 0
    %554 = vmatpush1.bf16.msra.mxu0 0
    %555 = vmatprep.mubr.bf16.mxu0 0
    %556 = vmatmul.mubr.bf16.gmra.mrb[0].mxu0 %v515
    %v557 = vpop.f32.mrb[0].mxu0
    %v558 = vadd.f32 0.0, %v557
    %v559 = vpop.f32.mrb[0].mxu0
    %v560 = vadd.f32 0.0, %v559
    %v561 = vpop.f32.mrb[0].mxu0
    %v562 = vadd.f32 0.0, %v561
    %v563 = vpop.f32.mrb[0].mxu0
    %v564 = vadd.f32 0.0, %v563
    %565 = vmatprep.mubr.bf16.mxu0 0
    %566 = vmatmul.mubr.bf16.gmra.mrb[0].mxu0 %v516
    %v567 = vpop.f32.mrb[0].mxu0
    %v568 = vadd.f32 0.0, %v567
    %v569 = vpop.f32.mrb[0].mxu0
    %v570 = vadd.f32 0.0, %v569
    %v571 = vpop.f32.mrb[0].mxu0
    %v572 = vadd.f32 0.0, %v571
    %v573 = vpop.f32.mrb[0].mxu0
    %v574 = vadd.f32 0.0, %v573
    %575 = vmatprep.mubr.bf16.mxu0 0
    %576 = vmatmul.mubr.bf16.gmra.mrb[0].mxu0 %v517
    %v577 = vpop.f32.mrb[0].mxu0
    %v578 = vadd.f32 0.0, %v577
    %v579 = vpop.f32.mrb[0].mxu0
    %v580 = vadd.f32 0.0, %v579
    %v581 = vpop.f32.mrb[0].mxu0
    %v582 = vadd.f32 0.0, %v581
    %v583 = vpop.f32.mrb[0].mxu0
    %v584 = vadd.f32 0.0, %v583
    %585 = vmatprep.mubr.bf16.mxu0 0
    %586 = vmatmul.mubr.bf16.gmra.mrb[0].mxu0 %v518
    %v587 = vpop.f32.mrb[0].mxu0
    %v588 = vadd.f32 0.0, %v587
    %v589 = vpop.f32.mrb[0].mxu0
    %v590 = vadd.f32 0.0, %v589
    %v591 = vpop.f32.mrb[0].mxu0
    %v592 = vadd.f32 0.0, %v591
    %v593 = vpop.f32.mrb[0].mxu0
    %v594 = vadd.f32 0.0, %v593
    %595 = vmatprep.mubr.bf16.mxu0 0
    %596 = vmatmul.mubr.bf16.gmra.mrb[0].mxu0 %v519
    %v597 = vpop.f32.mrb[0].mxu0
    %v598 = vadd.f32 0.0, %v597
    %v599 = vpop.f32.mrb[0].mxu0
    %v600 = vadd.f32 0.0, %v599
    %v601 = vpop.f32.mrb[0].mxu0
    %v602 = vadd.f32 0.0, %v601
    %v603 = vpop.f32.mrb[0].mxu0
    %v604 = vadd.f32 0.0, %v603
    %605 = vmatprep.mubr.bf16.mxu0 0
    %606 = vmatmul.mubr.bf16.gmra.mrb[0].mxu0 %v520
    %v607 = vpop.f32.mrb[0].mxu0
    %v608 = vadd.f32 0.0, %v607
    %v609 = vpop.f32.mrb[0].mxu0
    %v610 = vadd.f32 0.0, %v609
    %v611 = vpop.f32.mrb[0].mxu0
    %v612 = vadd.f32 0.0, %v611
    %v613 = vpop.f32.mrb[0].mxu0
    %v614 = vadd.f32 0.0, %v613
    %615 = vmatprep.mubr.bf16.mxu0 0
    %616 = vmatmul.mubr.bf16.gmra.mrb[0].mxu0 %v521
    %v617 = vpop.f32.mrb[0].mxu0
    %v618 = vadd.f32 0.0, %v617
    %v619 = vpop.f32.mrb[0].mxu0
    %v620 = vadd.f32 0.0, %v619
    %v621 = vpop.f32.mrb[0].mxu0
    %v622 = vadd.f32 0.0, %v621
    %v623 = vpop.f32.mrb[0].mxu0
    %v624 = vadd.f32 0.0, %v623
    %625 = vmatprep.mubr.bf16.mxu0 0
    %626 = vmatmul.mubr.bf16.gmra.mrb[0].mxu0 %v522
    %v627 = vpop.f32.mrb[0].mxu0
    %v628 = vadd.f32 0.0, %v627
    %v629 = vpop.f32.mrb[0].mxu0
    %v630 = vadd.f32 0.0, %v629
    %v631 = vpop.f32.mrb[0].mxu0
    %v632 = vadd.f32 0.0, %v631
    %v633 = vpop.f32.mrb[0].mxu0
    %v634 = vadd.f32 0.0, %v633
    %635 = vdwg.mxu0
    %v636 = vld [vmem:[%s3] sm:$0x1]
    %v637 = vlaneseq
    %v638 = vshrl.u32 %v637, 7
    %v639 = vsub.s32 0, %v638
    %v640 = vrot.slane %v636, %v639
    %v641 = vadd.f32 %v558, %v640
    %v642 = vadd.f32 %v562, %v640
    %v643 = vadd.f32 %v568, %v640
    %v644 = vadd.f32 %v572, %v640
    %v645 = vadd.f32 %v578, %v640
    %v646 = vadd.f32 %v582, %v640
    %v647 = vadd.f32 %v588, %v640
    %v648 = vadd.f32 %v592, %v640
    %v649 = vadd.f32 %v598, %v640
    %v650 = vadd.f32 %v602, %v640
    %v651 = vadd.f32 %v608, %v640
    %v652 = vadd.f32 %v612, %v640
    %v653 = vadd.f32 %v618, %v640
    %v654 = vadd.f32 %v622, %v640
    %v655 = vadd.f32 %v628, %v640
    %v656 = vadd.f32 %v632, %v640
    %v657 = vmax.f32 %v641, 0.0
    %v658 = vmax.f32 %v642, 0.0
    %v659 = vmax.f32 %v643, 0.0
    %v660 = vmax.f32 %v644, 0.0
    %v661 = vmax.f32 %v645, 0.0
    %v662 = vmax.f32 %v646, 0.0
    %v663 = vmax.f32 %v647, 0.0
    %v664 = vmax.f32 %v648, 0.0
    %v665 = vmax.f32 %v649, 0.0
    %v666 = vmax.f32 %v650, 0.0
    %v667 = vmax.f32 %v651, 0.0
    %v668 = vmax.f32 %v652, 0.0
    %v669 = vmax.f32 %v653, 0.0
    %v670 = vmax.f32 %v654, 0.0
    %v671 = vmax.f32 %v655, 0.0
    %v672 = vmax.f32 %v656, 0.0
    %v673 = vpack.c.bf16 %v658, %v657
    %v674 = vpack.c.bf16 %v660, %v659
    %v675 = vpack.c.bf16 %v662, %v661
    %v676 = vpack.c.bf16 %v664, %v663
    %v677 = vpack.c.bf16 %v666, %v665
    %v678 = vpack.c.bf16 %v668, %v667
    %v679 = vpack.c.bf16 %v670, %v669
    %v680 = vpack.c.bf16 %v672, %v671
    %v681 = vld [vmem:[%s3 + $0x1] sm:$0x1]
    %v682 = vlaneseq
    %v683 = vshrl.u32 %v682, 7
    %v684 = vsub.s32 0, %v683
    %v685 = vrot.slane %v681, %v684
    %v686 = vadd.f32 %v560, %v685
    %v687 = vadd.f32 %v564, %v685
    %v688 = vadd.f32 %v570, %v685
    %v689 = vadd.f32 %v574, %v685
    %v690 = vadd.f32 %v580, %v685
    %v691 = vadd.f32 %v584, %v685
    %v692 = vadd.f32 %v590, %v685
    %v693 = vadd.f32 %v594, %v685
    %v694 = vadd.f32 %v600, %v685
    %v695 = vadd.f32 %v604, %v685
    %v696 = vadd.f32 %v610, %v685
    %v697 = vadd.f32 %v614, %v685
    %v698 = vadd.f32 %v620, %v685
    %v699 = vadd.f32 %v624, %v685
    %v700 = vadd.f32 %v630, %v685
    %v701 = vadd.f32 %v634, %v685
    %v702 = vmax.f32 %v686, 0.0
    %v703 = vmax.f32 %v687, 0.0
    %v704 = vmax.f32 %v688, 0.0
    %v705 = vmax.f32 %v689, 0.0
    %v706 = vmax.f32 %v690, 0.0
    %v707 = vmax.f32 %v691, 0.0
    %v708 = vmax.f32 %v692, 0.0
    %v709 = vmax.f32 %v693, 0.0
    %v710 = vmax.f32 %v694, 0.0
    %v711 = vmax.f32 %v695, 0.0
    %v712 = vmax.f32 %v696, 0.0
    %v713 = vmax.f32 %v697, 0.0
    %v714 = vmax.f32 %v698, 0.0
    %v715 = vmax.f32 %v699, 0.0
    %v716 = vmax.f32 %v700, 0.0
    %v717 = vmax.f32 %v701, 0.0
    %v718 = vpack.c.bf16 %v703, %v702
    %v719 = vpack.c.bf16 %v705, %v704
    %v720 = vpack.c.bf16 %v707, %v706
    %v721 = vpack.c.bf16 %v709, %v708
    %v722 = vpack.c.bf16 %v711, %v710
    %v723 = vpack.c.bf16 %v713, %v712
    %v724 = vpack.c.bf16 %v715, %v714
    %v725 = vpack.c.bf16 %v717, %v716
    %s726 = scalar_lea.vmem [#allocation4], 64
    %v727 = vld [vmem:[%s726] sm:$0xf]
    %v728 = vld [vmem:[%s726 + $0x4] sm:$0xf]
    %v729 = vld [vmem:[%s726 + $0x8] sm:$0xf]
    %v730 = vld [vmem:[%s726 + $0xc] sm:$0xf]
    %v731 = vld [vmem:[%s726 + $0x10] sm:$0xf]
    %v732 = vld [vmem:[%s726 + $0x14] sm:$0xf]
    %v733 = vld [vmem:[%s726 + $0x18] sm:$0xf]
    %v734 = vld [vmem:[%s726 + $0x1c] sm:$0xf]
    %v735 = vld [vmem:[%s726 + $0x20] sm:$0xf]
    %v736 = vld [vmem:[%s726 + $0x24] sm:$0xf]
    %v737 = vld [vmem:[%s726 + $0x28] sm:$0xf]
    %v738 = vld [vmem:[%s726 + $0x2c] sm:$0xf]
    %v739 = vld [vmem:[%s726 + $0x30] sm:$0xf]
    %v740 = vld [vmem:[%s726 + $0x34] sm:$0xf]
    %v741 = vld [vmem:[%s726 + $0x38] sm:$0xf]
    %v742 = vld [vmem:[%s726 + $0x3c] sm:$0xf]
    %v759 = vunpack.c.l.b16 %v727
    %v760 = vunpack.c.l.b16 %v728
    %v761 = vunpack.c.l.b16 %v729
    %v762 = vunpack.c.l.b16 %v730
    %v763 = vunpack.c.l.b16 %v731
    %v764 = vunpack.c.l.b16 %v732
    %v765 = vunpack.c.l.b16 %v733
    %v766 = vunpack.c.l.b16 %v734
    %v767 = vunpack.c.l.b16 %v735
    %v768 = vunpack.c.l.b16 %v736
    %v769 = vunpack.c.l.b16 %v737
    %v770 = vunpack.c.l.b16 %v738
    %v771 = vunpack.c.l.b16 %v739
    %v772 = vunpack.c.l.b16 %v740
    %v773 = vunpack.c.l.b16 %v741
    %v774 = vunpack.c.l.b16 %v742
    %v775 = vpack.c.b16 %v760, %v759
    %v776 = vpack.c.b16 %v762, %v761
    %v777 = vpack.c.b16 %v764, %v763
    %v778 = vpack.c.b16 %v766, %v765
    %v779 = vpack.c.b16 %v768, %v767
    %v780 = vpack.c.b16 %v770, %v769
    %v781 = vpack.c.b16 %v772, %v771
    %v782 = vpack.c.b16 %v774, %v773
    %791 = vmatprep.subr.bf16.mxu0 0
    %792 = vmatpush1.bf16.msra.mxu0 %v775
    %793 = vmatprep.subr.bf16.mxu0 0
    %794 = vmatpush1.bf16.msra.mxu0 %v776
    %795 = vmatprep.subr.bf16.mxu0 0
    %796 = vmatpush1.bf16.msra.mxu0 %v777
    %797 = vmatprep.subr.bf16.mxu0 0
    %798 = vmatpush1.bf16.msra.mxu0 %v778
    %799 = vmatprep.subr.bf16.mxu0 0
    %800 = vmatpush1.bf16.msra.mxu0 %v779
    %801 = vmatprep.subr.bf16.mxu0 0
    %802 = vmatpush1.bf16.msra.mxu0 %v780
    %803 = vmatprep.subr.bf16.mxu0 0
    %804 = vmatpush1.bf16.msra.mxu0 %v781
    %805 = vmatprep.subr.bf16.mxu0 0
    %806 = vmatpush1.bf16.msra.mxu0 %v782
    %807 = vmatprep.subr.bf16.mxu0 0
    %808 = vmatpush1.bf16.msra.mxu0 0
    %809 = vmatprep.subr.bf16.mxu0 0
    %810 = vmatpush1.bf16.msra.mxu0 0
    %811 = vmatprep.subr.bf16.mxu0 0
    %812 = vmatpush1.bf16.msra.mxu0 0
    %813 = vmatprep.subr.bf16.mxu0 0
    %814 = vmatpush1.bf16.msra.mxu0 0
    %815 = vmatprep.subr.bf16.mxu0 0
    %816 = vmatpush1.bf16.msra.mxu0 0
    %817 = vmatprep.subr.bf16.mxu0 0
    %818 = vmatpush1.bf16.msra.mxu0 0
    %819 = vmatprep.subr.bf16.mxu0 0
    %820 = vmatpush1.bf16.msra.mxu0 0
    %821 = vmatprep.subr.bf16.mxu0 0
    %822 = vmatpush1.bf16.msra.mxu0 0
    %823 = vmatprep.mubr.bf16.mxu0 0
    %824 = vmatmul.mubr.bf16.gmra.mrb[0].mxu0 %v673
    %v825 = vpop.f32.mrb[0].mxu0
    %v826 = vadd.f32 0.0, %v825
    %v827 = vpop.f32.mrb[0].mxu0
    %v828 = vpop.f32.mrb[0].mxu0
    %v829 = vadd.f32 0.0, %v828
    %v830 = vpop.f32.mrb[0].mxu0
    %831 = vmatprep.mubr.bf16.mxu0 0
    %832 = vmatmul.mubr.bf16.gmra.mrb[0].mxu0 %v674
    %v833 = vpop.f32.mrb[0].mxu0
    %v834 = vadd.f32 0.0, %v833
    %v835 = vpop.f32.mrb[0].mxu0
    %v836 = vpop.f32.mrb[0].mxu0
    %v837 = vadd.f32 0.0, %v836
    %v838 = vpop.f32.mrb[0].mxu0
    %839 = vmatprep.mubr.bf16.mxu0 0
    %840 = vmatmul.mubr.bf16.gmra.mrb[0].mxu0 %v675
    %v841 = vpop.f32.mrb[0].mxu0
    %v842 = vadd.f32 0.0, %v841
    %v843 = vpop.f32.mrb[0].mxu0
    %v844 = vpop.f32.mrb[0].mxu0
    %v845 = vadd.f32 0.0, %v844
    %v846 = vpop.f32.mrb[0].mxu0
    %847 = vmatprep.mubr.bf16.mxu0 0
    %848 = vmatmul.mubr.bf16.gmra.mrb[0].mxu0 %v676
    %v849 = vpop.f32.mrb[0].mxu0
    %v850 = vadd.f32 0.0, %v849
    %v851 = vpop.f32.mrb[0].mxu0
    %v852 = vpop.f32.mrb[0].mxu0
    %v853 = vadd.f32 0.0, %v852
    %v854 = vpop.f32.mrb[0].mxu0
    %855 = vmatprep.mubr.bf16.mxu0 0
    %856 = vmatmul.mubr.bf16.gmra.mrb[0].mxu0 %v677
    %v857 = vpop.f32.mrb[0].mxu0
    %v858 = vadd.f32 0.0, %v857
    %v859 = vpop.f32.mrb[0].mxu0
    %v860 = vpop.f32.mrb[0].mxu0
    %v861 = vadd.f32 0.0, %v860
    %v862 = vpop.f32.mrb[0].mxu0
    %863 = vmatprep.mubr.bf16.mxu0 0
    %864 = vmatmul.mubr.bf16.gmra.mrb[0].mxu0 %v678
    %v865 = vpop.f32.mrb[0].mxu0
    %v866 = vadd.f32 0.0, %v865
    %v867 = vpop.f32.mrb[0].mxu0
    %v868 = vpop.f32.mrb[0].mxu0
    %v869 = vadd.f32 0.0, %v868
    %v870 = vpop.f32.mrb[0].mxu0
    %871 = vmatprep.mubr.bf16.mxu0 0
    %872 = vmatmul.mubr.bf16.gmra.mrb[0].mxu0 %v679
    %v873 = vpop.f32.mrb[0].mxu0
    %v874 = vadd.f32 0.0, %v873
    %v875 = vpop.f32.mrb[0].mxu0
    %v876 = vpop.f32.mrb[0].mxu0
    %v877 = vadd.f32 0.0, %v876
    %v878 = vpop.f32.mrb[0].mxu0
    %879 = vmatprep.mubr.bf16.mxu0 0
    %880 = vmatmul.mubr.bf16.gmra.mrb[0].mxu0 %v680
    %v881 = vpop.f32.mrb[0].mxu0
    %v882 = vadd.f32 0.0, %v881
    %v883 = vpop.f32.mrb[0].mxu0
    %v884 = vpop.f32.mrb[0].mxu0
    %v885 = vadd.f32 0.0, %v884
    %v886 = vpop.f32.mrb[0].mxu0
    %887 = vdwg.mxu0
    %v904 = vunpack.c.l.b16 %v108
    %v905 = vunpack.c.l.b16 %v109
    %v906 = vunpack.c.l.b16 %v110
    %v907 = vunpack.c.l.b16 %v111
    %v908 = vunpack.c.l.b16 %v112
    %v909 = vunpack.c.l.b16 %v113
    %v910 = vunpack.c.l.b16 %v114
    %v911 = vunpack.c.l.b16 %v115
    %v912 = vunpack.c.l.b16 %v116
    %v913 = vunpack.c.l.b16 %v117
    %v914 = vunpack.c.l.b16 %v118
    %v915 = vunpack.c.l.b16 %v119
    %v916 = vunpack.c.l.b16 %v120
    %v917 = vunpack.c.l.b16 %v121
    %v918 = vunpack.c.l.b16 %v122
    %v919 = vunpack.c.l.b16 %v123
    %v920 = vpack.c.b16 %v905, %v904
    %v921 = vpack.c.b16 %v907, %v906
    %v922 = vpack.c.b16 %v909, %v908
    %v923 = vpack.c.b16 %v911, %v910
    %v924 = vpack.c.b16 %v913, %v912
    %v925 = vpack.c.b16 %v915, %v914
    %v926 = vpack.c.b16 %v917, %v916
    %v927 = vpack.c.b16 %v919, %v918
    %936 = vmatprep.subr.bf16.mxu0 0
    %937 = vmatpush1.bf16.msra.mxu0 %v920
    %938 = vmatprep.subr.bf16.mxu0 0
    %939 = vmatpush1.bf16.msra.mxu0 %v921
    %940 = vmatprep.subr.bf16.mxu0 0
    %941 = vmatpush1.bf16.msra.mxu0 %v922
    %942 = vmatprep.subr.bf16.mxu0 0
    %943 = vmatpush1.bf16.msra.mxu0 %v923
    %944 = vmatprep.subr.bf16.mxu0 0
    %945 = vmatpush1.bf16.msra.mxu0 %v924
    %946 = vmatprep.subr.bf16.mxu0 0
    %947 = vmatpush1.bf16.msra.mxu0 %v925
    %948 = vmatprep.subr.bf16.mxu0 0
    %949 = vmatpush1.bf16.msra.mxu0 %v926
    %950 = vmatprep.subr.bf16.mxu0 0
    %951 = vmatpush1.bf16.msra.mxu0 %v927
    %952 = vmatprep.subr.bf16.mxu0 0
    %953 = vmatpush1.bf16.msra.mxu0 0
    %954 = vmatprep.subr.bf16.mxu0 0
    %955 = vmatpush1.bf16.msra.mxu0 0
    %956 = vmatprep.subr.bf16.mxu0 0
    %957 = vmatpush1.bf16.msra.mxu0 0
    %958 = vmatprep.subr.bf16.mxu0 0
    %959 = vmatpush1.bf16.msra.mxu0 0
    %960 = vmatprep.subr.bf16.mxu0 0
    %961 = vmatpush1.bf16.msra.mxu0 0
    %962 = vmatprep.subr.bf16.mxu0 0
    %963 = vmatpush1.bf16.msra.mxu0 0
    %964 = vmatprep.subr.bf16.mxu0 0
    %965 = vmatpush1.bf16.msra.mxu0 0
    %966 = vmatprep.subr.bf16.mxu0 0
    %967 = vmatpush1.bf16.msra.mxu0 0
    %968 = vmatprep.mubr.bf16.mxu0 0
    %969 = vmatmul.mubr.bf16.gmra.mrb[0].mxu0 %v172
    %v970 = vpop.f32.mrb[0].mxu0
    %v971 = vadd.f32 %v826, %v970
    %v972 = vpop.f32.mrb[0].mxu0
    %v973 = vpop.f32.mrb[0].mxu0
    %v974 = vadd.f32 %v829, %v973
    %v975 = vpop.f32.mrb[0].mxu0
    %976 = vmatprep.mubr.bf16.mxu0 0
    %977 = vmatmul.mubr.bf16.gmra.mrb[0].mxu0 %v173
    %v978 = vpop.f32.mrb[0].mxu0
    %v979 = vadd.f32 %v834, %v978
    %v980 = vpop.f32.mrb[0].mxu0
    %v981 = vpop.f32.mrb[0].mxu0
    %v982 = vadd.f32 %v837, %v981
    %v983 = vpop.f32.mrb[0].mxu0
    %984 = vmatprep.mubr.bf16.mxu0 0
    %985 = vmatmul.mubr.bf16.gmra.mrb[0].mxu0 %v174
    %v986 = vpop.f32.mrb[0].mxu0
    %v987 = vadd.f32 %v842, %v986
    %v988 = vpop.f32.mrb[0].mxu0
    %v989 = vpop.f32.mrb[0].mxu0
    %v990 = vadd.f32 %v845, %v989
    %v991 = vpop.f32.mrb[0].mxu0
    %992 = vmatprep.mubr.bf16.mxu0 0
    %993 = vmatmul.mubr.bf16.gmra.mrb[0].mxu0 %v175
    %v994 = vpop.f32.mrb[0].mxu0
    %v995 = vadd.f32 %v850, %v994
    %v996 = vpop.f32.mrb[0].mxu0
    %v997 = vpop.f32.mrb[0].mxu0
    %v998 = vadd.f32 %v853, %v997
    %v999 = vpop.f32.mrb[0].mxu0
    %1000 = vmatprep.mubr.bf16.mxu0 0
    %1001 = vmatmul.mubr.bf16.gmra.mrb[0].mxu0 %v176
    %v1002 = vpop.f32.mrb[0].mxu0
    %v1003 = vadd.f32 %v858, %v1002
    %v1004 = vpop.f32.mrb[0].mxu0
    %v1005 = vpop.f32.mrb[0].mxu0
    %v1006 = vadd.f32 %v861, %v1005
    %v1007 = vpop.f32.mrb[0].mxu0
    %1008 = vmatprep.mubr.bf16.mxu0 0
    %1009 = vmatmul.mubr.bf16.gmra.mrb[0].mxu0 %v177
    %v1010 = vpop.f32.mrb[0].mxu0
    %v1011 = vadd.f32 %v866, %v1010
    %v1012 = vpop.f32.mrb[0].mxu0
    %v1013 = vpop.f32.mrb[0].mxu0
    %v1014 = vadd.f32 %v869, %v1013
    %v1015 = vpop.f32.mrb[0].mxu0
    %1016 = vmatprep.mubr.bf16.mxu0 0
    %1017 = vmatmul.mubr.bf16.gmra.mrb[0].mxu0 %v178
    %v1018 = vpop.f32.mrb[0].mxu0
    %v1019 = vadd.f32 %v874, %v1018
    %v1020 = vpop.f32.mrb[0].mxu0
    %v1021 = vpop.f32.mrb[0].mxu0
    %v1022 = vadd.f32 %v877, %v1021
    %v1023 = vpop.f32.mrb[0].mxu0
    %1024 = vmatprep.mubr.bf16.mxu0 0
    %1025 = vmatmul.mubr.bf16.gmra.mrb[0].mxu0 %v179
    %v1026 = vpop.f32.mrb[0].mxu0
    %v1027 = vadd.f32 %v882, %v1026
    %v1028 = vpop.f32.mrb[0].mxu0
    %v1029 = vpop.f32.mrb[0].mxu0
    %v1030 = vadd.f32 %v885, %v1029
    %v1031 = vpop.f32.mrb[0].mxu0
    %1032 = vdwg.mxu0
    %s1033 = scalar_lea.vmem %s2, 128
    %v1034 = vld [vmem:[%s1033] sm:$0xf]
    %v1035 = vld [vmem:[%s1033 + $0x4] sm:$0xf]
    %v1036 = vld [vmem:[%s1033 + $0x8] sm:$0xf]
    %v1037 = vld [vmem:[%s1033 + $0xc] sm:$0xf]
    %v1038 = vld [vmem:[%s1033 + $0x10] sm:$0xf]
    %v1039 = vld [vmem:[%s1033 + $0x14] sm:$0xf]
    %v1040 = vld [vmem:[%s1033 + $0x18] sm:$0xf]
    %v1041 = vld [vmem:[%s1033 + $0x1c] sm:$0xf]
    %v1042 = vld [vmem:[%s1033 + $0x20] sm:$0xf]
    %v1043 = vld [vmem:[%s1033 + $0x24] sm:$0xf]
    %v1044 = vld [vmem:[%s1033 + $0x28] sm:$0xf]
    %v1045 = vld [vmem:[%s1033 + $0x2c] sm:$0xf]
    %v1046 = vld [vmem:[%s1033 + $0x30] sm:$0xf]
    %v1047 = vld [vmem:[%s1033 + $0x34] sm:$0xf]
    %v1048 = vld [vmem:[%s1033 + $0x38] sm:$0xf]
    %v1049 = vld [vmem:[%s1033 + $0x3c] sm:$0xf]
    %v1066 = vunpack.c.l.b16 %v1034
    %v1067 = vunpack.c.l.b16 %v1035
    %v1068 = vunpack.c.l.b16 %v1036
    %v1069 = vunpack.c.l.b16 %v1037
    %v1070 = vunpack.c.l.b16 %v1038
    %v1071 = vunpack.c.l.b16 %v1039
    %v1072 = vunpack.c.l.b16 %v1040
    %v1073 = vunpack.c.l.b16 %v1041
    %v1074 = vunpack.c.l.b16 %v1042
    %v1075 = vunpack.c.l.b16 %v1043
    %v1076 = vunpack.c.l.b16 %v1044
    %v1077 = vunpack.c.l.b16 %v1045
    %v1078 = vunpack.c.l.b16 %v1046
    %v1079 = vunpack.c.l.b16 %v1047
    %v1080 = vunpack.c.l.b16 %v1048
    %v1081 = vunpack.c.l.b16 %v1049
    %v1082 = vpack.c.b16 %v1067, %v1066
    %v1083 = vpack.c.b16 %v1069, %v1068
    %v1084 = vpack.c.b16 %v1071, %v1070
    %v1085 = vpack.c.b16 %v1073, %v1072
    %v1086 = vpack.c.b16 %v1075, %v1074
    %v1087 = vpack.c.b16 %v1077, %v1076
    %v1088 = vpack.c.b16 %v1079, %v1078
    %v1089 = vpack.c.b16 %v1081, %v1080
    %1098 = vmatprep.subr.bf16.mxu0 0
    %1099 = vmatpush1.bf16.msra.mxu0 %v1082
    %1100 = vmatprep.subr.bf16.mxu0 0
    %1101 = vmatpush1.bf16.msra.mxu0 %v1083
    %1102 = vmatprep.subr.bf16.mxu0 0
    %1103 = vmatpush1.bf16.msra.mxu0 %v1084
    %1104 = vmatprep.subr.bf16.mxu0 0
    %1105 = vmatpush1.bf16.msra.mxu0 %v1085
    %1106 = vmatprep.subr.bf16.mxu0 0
    %1107 = vmatpush1.bf16.msra.mxu0 %v1086
    %1108 = vmatprep.subr.bf16.mxu0 0
    %1109 = vmatpush1.bf16.msra.mxu0 %v1087
    %1110 = vmatprep.subr.bf16.mxu0 0
    %1111 = vmatpush1.bf16.msra.mxu0 %v1088
    %1112 = vmatprep.subr.bf16.mxu0 0
    %1113 = vmatpush1.bf16.msra.mxu0 %v1089
    %1114 = vmatprep.subr.bf16.mxu0 0
    %1115 = vmatpush1.bf16.msra.mxu0 0
    %1116 = vmatprep.subr.bf16.mxu0 0
    %1117 = vmatpush1.bf16.msra.mxu0 0
    %1118 = vmatprep.subr.bf16.mxu0 0
    %1119 = vmatpush1.bf16.msra.mxu0 0
    %1120 = vmatprep.subr.bf16.mxu0 0
    %1121 = vmatpush1.bf16.msra.mxu0 0
    %1122 = vmatprep.subr.bf16.mxu0 0
    %1123 = vmatpush1.bf16.msra.mxu0 0
    %1124 = vmatprep.subr.bf16.mxu0 0
    %1125 = vmatpush1.bf16.msra.mxu0 0
    %1126 = vmatprep.subr.bf16.mxu0 0
    %1127 = vmatpush1.bf16.msra.mxu0 0
    %1128 = vmatprep.subr.bf16.mxu0 0
    %1129 = vmatpush1.bf16.msra.mxu0 0
    %1130 = vmatprep.mubr.bf16.mxu0 0
    %1131 = vmatmul.mubr.bf16.gmra.mrb[0].mxu0 %v718
    %v1132 = vpop.f32.mrb[0].mxu0
    %v1133 = vadd.f32 0.0, %v1132
    %v1134 = vpop.f32.mrb[0].mxu0
    %v1135 = vpop.f32.mrb[0].mxu0
    %v1136 = vadd.f32 0.0, %v1135
    %v1137 = vpop.f32.mrb[0].mxu0
    %1138 = vmatprep.mubr.bf16.mxu0 0
    %1139 = vmatmul.mubr.bf16.gmra.mrb[0].mxu0 %v719
    %v1140 = vpop.f32.mrb[0].mxu0
    %v1141 = vadd.f32 0.0, %v1140
    %v1142 = vpop.f32.mrb[0].mxu0
    %v1143 = vpop.f32.mrb[0].mxu0
    %v1144 = vadd.f32 0.0, %v1143
    %v1145 = vpop.f32.mrb[0].mxu0
    %1146 = vmatprep.mubr.bf16.mxu0 0
    %1147 = vmatmul.mubr.bf16.gmra.mrb[0].mxu0 %v720
    %v1148 = vpop.f32.mrb[0].mxu0
    %v1149 = vadd.f32 0.0, %v1148
    %v1150 = vpop.f32.mrb[0].mxu0
    %v1151 = vpop.f32.mrb[0].mxu0
    %v1152 = vadd.f32 0.0, %v1151
    %v1153 = vpop.f32.mrb[0].mxu0
    %1154 = vmatprep.mubr.bf16.mxu0 0
    %1155 = vmatmul.mubr.bf16.gmra.mrb[0].mxu0 %v721
    %v1156 = vpop.f32.mrb[0].mxu0
    %v1157 = vadd.f32 0.0, %v1156
    %v1158 = vpop.f32.mrb[0].mxu0
    %v1159 = vpop.f32.mrb[0].mxu0
    %v1160 = vadd.f32 0.0, %v1159
    %v1161 = vpop.f32.mrb[0].mxu0
    %1162 = vmatprep.mubr.bf16.mxu0 0
    %1163 = vmatmul.mubr.bf16.gmra.mrb[0].mxu0 %v722
    %v1164 = vpop.f32.mrb[0].mxu0
    %v1165 = vadd.f32 0.0, %v1164
    %v1166 = vpop.f32.mrb[0].mxu0
    %v1167 = vpop.f32.mrb[0].mxu0
    %v1168 = vadd.f32 0.0, %v1167
    %v1169 = vpop.f32.mrb[0].mxu0
    %1170 = vmatprep.mubr.bf16.mxu0 0
    %1171 = vmatmul.mubr.bf16.gmra.mrb[0].mxu0 %v723
    %v1172 = vpop.f32.mrb[0].mxu0
    %v1173 = vadd.f32 0.0, %v1172
    %v1174 = vpop.f32.mrb[0].mxu0
    %v1175 = vpop.f32.mrb[0].mxu0
    %v1176 = vadd.f32 0.0, %v1175
    %v1177 = vpop.f32.mrb[0].mxu0
    %1178 = vmatprep.mubr.bf16.mxu0 0
    %1179 = vmatmul.mubr.bf16.gmra.mrb[0].mxu0 %v724
    %v1180 = vpop.f32.mrb[0].mxu0
    %v1181 = vadd.f32 0.0, %v1180
    %v1182 = vpop.f32.mrb[0].mxu0
    %v1183 = vpop.f32.mrb[0].mxu0
    %v1184 = vadd.f32 0.0, %v1183
    %v1185 = vpop.f32.mrb[0].mxu0
    %1186 = vmatprep.mubr.bf16.mxu0 0
    %1187 = vmatmul.mubr.bf16.gmra.mrb[0].mxu0 %v725
    %v1188 = vpop.f32.mrb[0].mxu0
    %v1189 = vadd.f32 0.0, %v1188
    %v1190 = vpop.f32.mrb[0].mxu0
    %v1191 = vpop.f32.mrb[0].mxu0
    %v1192 = vadd.f32 0.0, %v1191
    %v1193 = vpop.f32.mrb[0].mxu0
    %1194 = vdwg.mxu0
    %v1195 = vpack.c.bf16 %v1136, %v1133
    %v1196 = vpack.c.bf16 %v1144, %v1141
    %v1197 = vpack.c.bf16 %v1152, %v1149
    %v1198 = vpack.c.bf16 %v1160, %v1157
    %v1199 = vpack.c.bf16 %v1168, %v1165
    %v1200 = vpack.c.bf16 %v1176, %v1173
    %v1201 = vpack.c.bf16 %v1184, %v1181
    %v1202 = vpack.c.bf16 %v1192, %v1189
    %v1203 = vld [vmem:[%s3 + $0x2] sm:$0x1]
    %v1204 = vlaneseq
    %v1205 = vshrl.u32 %v1204, 7
    %v1206 = vsub.s32 0, %v1205
    %v1207 = vrot.slane %v1203, %v1206
    %1208 = vmatprep.subr.bf16.mxu0 0
    %1209 = vmatpush1.bf16.msra.mxu0 %v1195
    %1210 = vmatprep.subr.bf16.mxu0 0
    %1211 = vmatpush1.bf16.msra.mxu0 %v1196
    %1212 = vmatprep.subr.bf16.mxu0 0
    %1213 = vmatpush1.bf16.msra.mxu0 %v1197
    %1214 = vmatprep.subr.bf16.mxu0 0
    %1215 = vmatpush1.bf16.msra.mxu0 %v1198
    %1216 = vmatprep.subr.bf16.mxu0 0
    %1217 = vmatpush1.bf16.msra.mxu0 %v1199
    %1218 = vmatprep.subr.bf16.mxu0 0
    %1219 = vmatpush1.bf16.msra.mxu0 %v1200
    %1220 = vmatprep.subr.bf16.mxu0 0
    %1221 = vmatpush1.bf16.msra.mxu0 %v1201
    %1222 = vmatprep.subr.bf16.mxu0 0
    %1223 = vmatpush1.bf16.msra.mxu0 %v1202
    %1224 = vmatprep.subr.bf16.mxu0 0
    %1225 = vmatpush1.bf16.msra.mxu0 0
    %1226 = vmatprep.subr.bf16.mxu0 0
    %1227 = vmatpush1.bf16.msra.mxu0 0
    %1228 = vmatprep.subr.bf16.mxu0 0
    %1229 = vmatpush1.bf16.msra.mxu0 0
    %1230 = vmatprep.subr.bf16.mxu0 0
    %1231 = vmatpush1.bf16.msra.mxu0 0
    %1232 = vmatprep.subr.bf16.mxu0 0
    %1233 = vmatpush1.bf16.msra.mxu0 0
    %1234 = vmatprep.subr.bf16.mxu0 0
    %1235 = vmatpush1.bf16.msra.mxu0 0
    %1236 = vmatprep.subr.bf16.mxu0 0
    %1237 = vmatpush1.bf16.msra.mxu0 0
    %1238 = vmatprep.subr.bf16.mxu0 0
    %1239 = vmatpush1.bf16.msra.mxu0 0
    %1240 = vmatprep.mubr.bf16.mxu0 0
    %1241 = vmatmul.mubr.bf16.gmra.mrb[0].mxu0 %v515
    %v1242 = vpop.f32.mrb[0].mxu0
    %v1243 = vadd.f32 %v1207, %v1242
    %v1244 = vpop.f32.mrb[0].mxu0
    %v1245 = vpop.f32.mrb[0].mxu0
    %v1246 = vadd.f32 %v1207, %v1245
    %v1247 = vpop.f32.mrb[0].mxu0
    %1248 = vmatprep.mubr.bf16.mxu0 0
    %1249 = vmatmul.mubr.bf16.gmra.mrb[0].mxu0 %v516
    %v1250 = vpop.f32.mrb[0].mxu0
    %v1251 = vadd.f32 %v1207, %v1250
    %v1252 = vpop.f32.mrb[0].mxu0
    %v1253 = vpop.f32.mrb[0].mxu0
    %v1254 = vadd.f32 %v1207, %v1253
    %v1255 = vpop.f32.mrb[0].mxu0
    %1256 = vmatprep.mubr.bf16.mxu0 0
    %1257 = vmatmul.mubr.bf16.gmra.mrb[0].mxu0 %v517
    %v1258 = vpop.f32.mrb[0].mxu0
    %v1259 = vadd.f32 %v1207, %v1258
    %v1260 = vpop.f32.mrb[0].mxu0
    %v1261 = vpop.f32.mrb[0].mxu0
    %v1262 = vadd.f32 %v1207, %v1261
    %v1263 = vpop.f32.mrb[0].mxu0
    %1264 = vmatprep.mubr.bf16.mxu0 0
    %1265 = vmatmul.mubr.bf16.gmra.mrb[0].mxu0 %v518
    %v1266 = vpop.f32.mrb[0].mxu0
    %v1267 = vadd.f32 %v1207, %v1266
    %v1268 = vpop.f32.mrb[0].mxu0
    %v1269 = vpop.f32.mrb[0].mxu0
    %v1270 = vadd.f32 %v1207, %v1269
    %v1271 = vpop.f32.mrb[0].mxu0
    %1272 = vmatprep.mubr.bf16.mxu0 0
    %1273 = vmatmul.mubr.bf16.gmra.mrb[0].mxu0 %v519
    %v1274 = vpop.f32.mrb[0].mxu0
    %v1275 = vadd.f32 %v1207, %v1274
    %v1276 = vpop.f32.mrb[0].mxu0
    %v1277 = vpop.f32.mrb[0].mxu0
    %v1278 = vadd.f32 %v1207, %v1277
    %v1279 = vpop.f32.mrb[0].mxu0
    %1280 = vmatprep.mubr.bf16.mxu0 0
    %1281 = vmatmul.mubr.bf16.gmra.mrb[0].mxu0 %v520
    %v1282 = vpop.f32.mrb[0].mxu0
    %v1283 = vadd.f32 %v1207, %v1282
    %v1284 = vpop.f32.mrb[0].mxu0
    %v1285 = vpop.f32.mrb[0].mxu0
    %v1286 = vadd.f32 %v1207, %v1285
    %v1287 = vpop.f32.mrb[0].mxu0
    %1288 = vmatprep.mubr.bf16.mxu0 0
    %1289 = vmatmul.mubr.bf16.gmra.mrb[0].mxu0 %v521
    %v1290 = vpop.f32.mrb[0].mxu0
    %v1291 = vadd.f32 %v1207, %v1290
    %v1292 = vpop.f32.mrb[0].mxu0
    %v1293 = vpop.f32.mrb[0].mxu0
    %v1294 = vadd.f32 %v1207, %v1293
    %v1295 = vpop.f32.mrb[0].mxu0
    %1296 = vmatprep.mubr.bf16.mxu0 0
    %1297 = vmatmul.mubr.bf16.gmra.mrb[0].mxu0 %v522
    %v1298 = vpop.f32.mrb[0].mxu0
    %v1299 = vadd.f32 %v1207, %v1298
    %v1300 = vpop.f32.mrb[0].mxu0
    %v1301 = vpop.f32.mrb[0].mxu0
    %v1302 = vadd.f32 %v1207, %v1301
    %v1303 = vpop.f32.mrb[0].mxu0
    %1304 = vdwg.mxu0
    %v1305 = vmax.f32 %v1243, 0.0
    %v1306 = vmax.f32 %v1246, 0.0
    %v1307 = vmax.f32 %v1251, 0.0
    %v1308 = vmax.f32 %v1254, 0.0
    %v1309 = vmax.f32 %v1259, 0.0
    %v1310 = vmax.f32 %v1262, 0.0
    %v1311 = vmax.f32 %v1267, 0.0
    %v1312 = vmax.f32 %v1270, 0.0
    %v1313 = vmax.f32 %v1275, 0.0
    %v1314 = vmax.f32 %v1278, 0.0
    %v1315 = vmax.f32 %v1283, 0.0
    %v1316 = vmax.f32 %v1286, 0.0
    %v1317 = vmax.f32 %v1291, 0.0
    %v1318 = vmax.f32 %v1294, 0.0
    %v1319 = vmax.f32 %v1299, 0.0
    %v1320 = vmax.f32 %v1302, 0.0
    %v1321 = vpack.c.bf16 %v1306, %v1305
    %v1322 = vpack.c.bf16 %v1308, %v1307
    %v1323 = vpack.c.bf16 %v1310, %v1309
    %v1324 = vpack.c.bf16 %v1312, %v1311
    %v1325 = vpack.c.bf16 %v1314, %v1313
    %v1326 = vpack.c.bf16 %v1316, %v1315
    %v1327 = vpack.c.bf16 %v1318, %v1317
    %v1328 = vpack.c.bf16 %v1320, %v1319
    %s1329 = scalar_lea.vmem [#allocation4], 128
    %v1330 = vld [vmem:[%s1329] sm:$0xf]
    %v1331 = vld [vmem:[%s1329 + $0x4] sm:$0xf]
    %v1332 = vld [vmem:[%s1329 + $0x8] sm:$0xf]
    %v1333 = vld [vmem:[%s1329 + $0xc] sm:$0xf]
    %v1334 = vld [vmem:[%s1329 + $0x10] sm:$0xf]
    %v1335 = vld [vmem:[%s1329 + $0x14] sm:$0xf]
    %v1336 = vld [vmem:[%s1329 + $0x18] sm:$0xf]
    %v1337 = vld [vmem:[%s1329 + $0x1c] sm:$0xf]
    %v1338 = vld [vmem:[%s1329 + $0x20] sm:$0xf]
    %v1339 = vld [vmem:[%s1329 + $0x24] sm:$0xf]
    %v1340 = vld [vmem:[%s1329 + $0x28] sm:$0xf]
    %v1341 = vld [vmem:[%s1329 + $0x2c] sm:$0xf]
    %v1342 = vld [vmem:[%s1329 + $0x30] sm:$0xf]
    %v1343 = vld [vmem:[%s1329 + $0x34] sm:$0xf]
    %v1344 = vld [vmem:[%s1329 + $0x38] sm:$0xf]
    %v1345 = vld [vmem:[%s1329 + $0x3c] sm:$0xf]
    %v1362 = vunpack.c.l.b16 %v1330
    %v1363 = vunpack.c.l.b16 %v1331
    %v1364 = vunpack.c.l.b16 %v1332
    %v1365 = vunpack.c.l.b16 %v1333
    %v1366 = vunpack.c.l.b16 %v1334
    %v1367 = vunpack.c.l.b16 %v1335
    %v1368 = vunpack.c.l.b16 %v1336
    %v1369 = vunpack.c.l.b16 %v1337
    %v1370 = vunpack.c.l.b16 %v1338
    %v1371 = vunpack.c.l.b16 %v1339
    %v1372 = vunpack.c.l.b16 %v1340
    %v1373 = vunpack.c.l.b16 %v1341
    %v1374 = vunpack.c.l.b16 %v1342
    %v1375 = vunpack.c.l.b16 %v1343
    %v1376 = vunpack.c.l.b16 %v1344
    %v1377 = vunpack.c.l.b16 %v1345
    %v1378 = vpack.c.b16 %v1363, %v1362
    %v1379 = vpack.c.b16 %v1365, %v1364
    %v1380 = vpack.c.b16 %v1367, %v1366
    %v1381 = vpack.c.b16 %v1369, %v1368
    %v1382 = vpack.c.b16 %v1371, %v1370
    %v1383 = vpack.c.b16 %v1373, %v1372
    %v1384 = vpack.c.b16 %v1375, %v1374
    %v1385 = vpack.c.b16 %v1377, %v1376
    %1394 = vmatprep.subr.bf16.mxu0 0
    %1395 = vmatpush1.bf16.msra.mxu0 %v1378
    %1396 = vmatprep.subr.bf16.mxu0 0
    %1397 = vmatpush1.bf16.msra.mxu0 %v1379
    %1398 = vmatprep.subr.bf16.mxu0 0
    %1399 = vmatpush1.bf16.msra.mxu0 %v1380
    %1400 = vmatprep.subr.bf16.mxu0 0
    %1401 = vmatpush1.bf16.msra.mxu0 %v1381
    %1402 = vmatprep.subr.bf16.mxu0 0
    %1403 = vmatpush1.bf16.msra.mxu0 %v1382
    %1404 = vmatprep.subr.bf16.mxu0 0
    %1405 = vmatpush1.bf16.msra.mxu0 %v1383
    %1406 = vmatprep.subr.bf16.mxu0 0
    %1407 = vmatpush1.bf16.msra.mxu0 %v1384
    %1408 = vmatprep.subr.bf16.mxu0 0
    %1409 = vmatpush1.bf16.msra.mxu0 %v1385
    %1410 = vmatprep.subr.bf16.mxu0 0
    %1411 = vmatpush1.bf16.msra.mxu0 0
    %1412 = vmatprep.subr.bf16.mxu0 0
    %1413 = vmatpush1.bf16.msra.mxu0 0
    %1414 = vmatprep.subr.bf16.mxu0 0
    %1415 = vmatpush1.bf16.msra.mxu0 0
    %1416 = vmatprep.subr.bf16.mxu0 0
    %1417 = vmatpush1.bf16.msra.mxu0 0
    %1418 = vmatprep.subr.bf16.mxu0 0
    %1419 = vmatpush1.bf16.msra.mxu0 0
    %1420 = vmatprep.subr.bf16.mxu0 0
    %1421 = vmatpush1.bf16.msra.mxu0 0
    %1422 = vmatprep.subr.bf16.mxu0 0
    %1423 = vmatpush1.bf16.msra.mxu0 0
    %1424 = vmatprep.subr.bf16.mxu0 0
    %1425 = vmatpush1.bf16.msra.mxu0 0
    %1426 = vmatprep.mubr.bf16.mxu0 0
    %1427 = vmatmul.mubr.bf16.gmra.mrb[0].mxu0 %v1321
    %v1428 = vpop.f32.mrb[0].mxu0
    %v1429 = vadd.f32 0.0, %v1428
    %v1430 = vpop.f32.mrb[0].mxu0
    %v1431 = vpop.f32.mrb[0].mxu0
    %v1432 = vadd.f32 0.0, %v1431
    %v1433 = vpop.f32.mrb[0].mxu0
    %1434 = vmatprep.mubr.bf16.mxu0 0
    %1435 = vmatmul.mubr.bf16.gmra.mrb[0].mxu0 %v1322
    %v1436 = vpop.f32.mrb[0].mxu0
    %v1437 = vadd.f32 0.0, %v1436
    %v1438 = vpop.f32.mrb[0].mxu0
    %v1439 = vpop.f32.mrb[0].mxu0
    %v1440 = vadd.f32 0.0, %v1439
    %v1441 = vpop.f32.mrb[0].mxu0
    %1442 = vmatprep.mubr.bf16.mxu0 0
    %1443 = vmatmul.mubr.bf16.gmra.mrb[0].mxu0 %v1323
    %v1444 = vpop.f32.mrb[0].mxu0
    %v1445 = vadd.f32 0.0, %v1444
    %v1446 = vpop.f32.mrb[0].mxu0
    %v1447 = vpop.f32.mrb[0].mxu0
    %v1448 = vadd.f32 0.0, %v1447
    %v1449 = vpop.f32.mrb[0].mxu0
    %1450 = vmatprep.mubr.bf16.mxu0 0
    %1451 = vmatmul.mubr.bf16.gmra.mrb[0].mxu0 %v1324
    %v1452 = vpop.f32.mrb[0].mxu0
    %v1453 = vadd.f32 0.0, %v1452
    %v1454 = vpop.f32.mrb[0].mxu0
    %v1455 = vpop.f32.mrb[0].mxu0
    %v1456 = vadd.f32 0.0, %v1455
    %v1457 = vpop.f32.mrb[0].mxu0
    %1458 = vmatprep.mubr.bf16.mxu0 0
    %1459 = vmatmul.mubr.bf16.gmra.mrb[0].mxu0 %v1325
    %v1460 = vpop.f32.mrb[0].mxu0
    %v1461 = vadd.f32 0.0, %v1460
    %v1462 = vpop.f32.mrb[0].mxu0
    %v1463 = vpop.f32.mrb[0].mxu0
    %v1464 = vadd.f32 0.0, %v1463
    %v1465 = vpop.f32.mrb[0].mxu0
    %1466 = vmatprep.mubr.bf16.mxu0 0
    %1467 = vmatmul.mubr.bf16.gmra.mrb[0].mxu0 %v1326
    %v1468 = vpop.f32.mrb[0].mxu0
    %v1469 = vadd.f32 0.0, %v1468
    %v1470 = vpop.f32.mrb[0].mxu0
    %v1471 = vpop.f32.mrb[0].mxu0
    %v1472 = vadd.f32 0.0, %v1471
    %v1473 = vpop.f32.mrb[0].mxu0
    %1474 = vmatprep.mubr.bf16.mxu0 0
    %1475 = vmatmul.mubr.bf16.gmra.mrb[0].mxu0 %v1327
    %v1476 = vpop.f32.mrb[0].mxu0
    %v1477 = vadd.f32 0.0, %v1476
    %v1478 = vpop.f32.mrb[0].mxu0
    %v1479 = vpop.f32.mrb[0].mxu0
    %v1480 = vadd.f32 0.0, %v1479
    %v1481 = vpop.f32.mrb[0].mxu0
    %1482 = vmatprep.mubr.bf16.mxu0 0
    %1483 = vmatmul.mubr.bf16.gmra.mrb[0].mxu0 %v1328
    %v1484 = vpop.f32.mrb[0].mxu0
    %v1485 = vadd.f32 0.0, %v1484
    %v1486 = vpop.f32.mrb[0].mxu0
    %v1487 = vpop.f32.mrb[0].mxu0
    %v1488 = vadd.f32 0.0, %v1487
    %v1489 = vpop.f32.mrb[0].mxu0
    %1490 = vdwg.mxu0
    %v1491 = vadd.f32 %v971, %v1429
    %v1492 = vadd.f32 %v974, %v1432
    %v1493 = vadd.f32 %v979, %v1437
    %v1494 = vadd.f32 %v982, %v1440
    %v1495 = vadd.f32 %v987, %v1445
    %v1496 = vadd.f32 %v990, %v1448
    %v1497 = vadd.f32 %v995, %v1453
    %v1498 = vadd.f32 %v998, %v1456
    %v1499 = vadd.f32 %v1003, %v1461
    %v1500 = vadd.f32 %v1006, %v1464
    %v1501 = vadd.f32 %v1011, %v1469
    %v1502 = vadd.f32 %v1014, %v1472
    %v1503 = vadd.f32 %v1019, %v1477
    %v1504 = vadd.f32 %v1022, %v1480
    %v1505 = vadd.f32 %v1027, %v1485
    %v1506 = vadd.f32 %v1030, %v1488
    %v1507 = vpack.c.bf16 %v1492, %v1491
    %v1508 = vpack.c.bf16 %v1494, %v1493
    %v1509 = vpack.c.bf16 %v1496, %v1495
    %v1510 = vpack.c.bf16 %v1498, %v1497
    %v1511 = vpack.c.bf16 %v1500, %v1499
    %v1512 = vpack.c.bf16 %v1502, %v1501
    %v1513 = vpack.c.bf16 %v1504, %v1503
    %v1514 = vpack.c.bf16 %v1506, %v1505
    %v1515 = vld [vmem:[%s5] sm:$0x1]
    %v1517 = vlaneseq
    %v1518 = vshrl.u32 %v1517, 7
    %v1519 = vsub.s32 0, %v1518
    %v1520 = vrot.slane %v1515, %v1519
    %1522 = vmatprep.subr.bf16.mxu0 0
    %1523 = vmatpush1.bf16.msra.mxu0 %v1507
    %1524 = vmatprep.subr.bf16.mxu0 0
    %1525 = vmatpush1.bf16.msra.mxu0 %v1508
    %1526 = vmatprep.subr.bf16.mxu0 0
    %1527 = vmatpush1.bf16.msra.mxu0 %v1509
    %1528 = vmatprep.subr.bf16.mxu0 0
    %1529 = vmatpush1.bf16.msra.mxu0 %v1510
    %1530 = vmatprep.subr.bf16.mxu0 0
    %1531 = vmatpush1.bf16.msra.mxu0 %v1511
    %1532 = vmatprep.subr.bf16.mxu0 0
    %1533 = vmatpush1.bf16.msra.mxu0 %v1512
    %1534 = vmatprep.subr.bf16.mxu0 0
    %1535 = vmatpush1.bf16.msra.mxu0 %v1513
    %1536 = vmatprep.subr.bf16.mxu0 0
    %1537 = vmatpush1.bf16.msra.mxu0 %v1514
    %1538 = vmatprep.subr.bf16.mxu0 0
    %1539 = vmatpush1.bf16.msra.mxu0 0
    %1540 = vmatprep.subr.bf16.mxu0 0
    %1541 = vmatpush1.bf16.msra.mxu0 0
    %1542 = vmatprep.subr.bf16.mxu0 0
    %1543 = vmatpush1.bf16.msra.mxu0 0
    %1544 = vmatprep.subr.bf16.mxu0 0
    %1545 = vmatpush1.bf16.msra.mxu0 0
    %1546 = vmatprep.subr.bf16.mxu0 0
    %1547 = vmatpush1.bf16.msra.mxu0 0
    %1548 = vmatprep.subr.bf16.mxu0 0
    %1549 = vmatpush1.bf16.msra.mxu0 0
    %1550 = vmatprep.subr.bf16.mxu0 0
    %1551 = vmatpush1.bf16.msra.mxu0 0
    %1552 = vmatprep.subr.bf16.mxu0 0
    %1553 = vmatpush1.bf16.msra.mxu0 0
    %1554 = vmatprep.mubr.bf16.mxu0 0
    %1555 = vmatmul.mubr.bf16.gmra.mrb[0].mxu0 %v515
    %v1556 = vpop.f32.mrb[0].mxu0
    %v1557 = vadd.f32 %v1520, %v1556
    %v1558 = vpop.f32.mrb[0].mxu0
    %v1559 = vpop.f32.mrb[0].mxu0
    %v1560 = vadd.f32 %v1520, %v1559
    %v1561 = vpop.f32.mrb[0].mxu0
    %1562 = vmatprep.mubr.bf16.mxu0 0
    %1563 = vmatmul.mubr.bf16.gmra.mrb[0].mxu0 %v516
    %v1564 = vpop.f32.mrb[0].mxu0
    %v1565 = vadd.f32 %v1520, %v1564
    %v1566 = vpop.f32.mrb[0].mxu0
    %v1567 = vpop.f32.mrb[0].mxu0
    %v1568 = vadd.f32 %v1520, %v1567
    %v1569 = vpop.f32.mrb[0].mxu0
    %1570 = vmatprep.mubr.bf16.mxu0 0
    %1571 = vmatmul.mubr.bf16.gmra.mrb[0].mxu0 %v517
    %v1572 = vpop.f32.mrb[0].mxu0
    %v1573 = vadd.f32 %v1520, %v1572
    %v1574 = vpop.f32.mrb[0].mxu0
    %v1575 = vpop.f32.mrb[0].mxu0
    %v1576 = vadd.f32 %v1520, %v1575
    %v1577 = vpop.f32.mrb[0].mxu0
    %1578 = vmatprep.mubr.bf16.mxu0 0
    %1579 = vmatmul.mubr.bf16.gmra.mrb[0].mxu0 %v518
    %v1580 = vpop.f32.mrb[0].mxu0
    %v1581 = vadd.f32 %v1520, %v1580
    %v1582 = vpop.f32.mrb[0].mxu0
    %v1583 = vpop.f32.mrb[0].mxu0
    %v1584 = vadd.f32 %v1520, %v1583
    %v1585 = vpop.f32.mrb[0].mxu0
    %1586 = vmatprep.mubr.bf16.mxu0 0
    %1587 = vmatmul.mubr.bf16.gmra.mrb[0].mxu0 %v519
    %v1588 = vpop.f32.mrb[0].mxu0
    %v1589 = vadd.f32 %v1520, %v1588
    %v1590 = vpop.f32.mrb[0].mxu0
    %v1591 = vpop.f32.mrb[0].mxu0
    %v1592 = vadd.f32 %v1520, %v1591
    %v1593 = vpop.f32.mrb[0].mxu0
    %1594 = vmatprep.mubr.bf16.mxu0 0
    %1595 = vmatmul.mubr.bf16.gmra.mrb[0].mxu0 %v520
    %v1596 = vpop.f32.mrb[0].mxu0
    %v1597 = vadd.f32 %v1520, %v1596
    %v1598 = vpop.f32.mrb[0].mxu0
    %v1599 = vpop.f32.mrb[0].mxu0
    %v1600 = vadd.f32 %v1520, %v1599
    %v1601 = vpop.f32.mrb[0].mxu0
    %1602 = vmatprep.mubr.bf16.mxu0 0
    %1603 = vmatmul.mubr.bf16.gmra.mrb[0].mxu0 %v521
    %v1604 = vpop.f32.mrb[0].mxu0
    %v1605 = vadd.f32 %v1520, %v1604
    %v1606 = vpop.f32.mrb[0].mxu0
    %v1607 = vpop.f32.mrb[0].mxu0
    %v1608 = vadd.f32 %v1520, %v1607
    %v1609 = vpop.f32.mrb[0].mxu0
    %1610 = vmatprep.mubr.bf16.mxu0 0
    %1611 = vmatmul.mubr.bf16.gmra.mrb[0].mxu0 %v522
    %v1612 = vpop.f32.mrb[0].mxu0
    %v1613 = vadd.f32 %v1520, %v1612
    %v1614 = vpop.f32.mrb[0].mxu0
    %v1615 = vpop.f32.mrb[0].mxu0
    %v1616 = vadd.f32 %v1520, %v1615
    %v1617 = vpop.f32.mrb[0].mxu0
    %1618 = vdwg.mxu0
    %v1619 = vmax.f32 %v1557, 0.0
    %v1620 = vmax.f32 %v1560, 0.0
    %v1621 = vmax.f32 %v1565, 0.0
    %v1622 = vmax.f32 %v1568, 0.0
    %v1623 = vmax.f32 %v1573, 0.0
    %v1624 = vmax.f32 %v1576, 0.0
    %v1625 = vmax.f32 %v1581, 0.0
    %v1626 = vmax.f32 %v1584, 0.0
    %v1627 = vmax.f32 %v1589, 0.0
    %v1628 = vmax.f32 %v1592, 0.0
    %v1629 = vmax.f32 %v1597, 0.0
    %v1630 = vmax.f32 %v1600, 0.0
    %v1631 = vmax.f32 %v1605, 0.0
    %v1632 = vmax.f32 %v1608, 0.0
    %v1633 = vmax.f32 %v1613, 0.0
    %v1634 = vmax.f32 %v1616, 0.0
    %1635 = vst [vmem:[%s6] sm:$0xff] %v1619
    %1636 = vst [vmem:[%s6 + $0x8] sm:$0xff] %v1620
    %1637 = vst [vmem:[%s6 + $0x10] sm:$0xff] %v1621
    %1638 = vst [vmem:[%s6 + $0x18] sm:$0xff] %v1622
    %1639 = vst [vmem:[%s6 + $0x20] sm:$0xff] %v1623
    %1640 = vst [vmem:[%s6 + $0x28] sm:$0xff] %v1624
    %1641 = vst [vmem:[%s6 + $0x30] sm:$0xff] %v1625
    %1642 = vst [vmem:[%s6 + $0x38] sm:$0xff] %v1626
    %1643 = vst [vmem:[%s6 + $0x40] sm:$0xff] %v1627
    %1644 = vst [vmem:[%s6 + $0x48] sm:$0xff] %v1628
    %1645 = vst [vmem:[%s6 + $0x50] sm:$0xff] %v1629
    %1646 = vst [vmem:[%s6 + $0x58] sm:$0xff] %v1630
    %1647 = vst [vmem:[%s6 + $0x60] sm:$0xff] %v1631
    %1648 = vst [vmem:[%s6 + $0x68] sm:$0xff] %v1632
    %1649 = vst [vmem:[%s6 + $0x70] sm:$0xff] %v1633
    %1650 = vst [vmem:[%s6 + $0x78] sm:$0xff] %v1634
    // Predicated region
    $region60: #{inception_gcn_block.1} parent=1 // pred_check
      _
    $region61: #{inception_gcn_block.1} parent=1 // pred_check_branch
      %1652 = sbr.rel (0) target = $region63
    $region62: #{inception_gcn_block.1} parent=1 // pred_region
      _
    $region63: #{inception_gcn_block.1} parent=1 // pred_fallthru
      _
    // Predicated region
    $region64: #{inception_gcn_block.1} parent=1 // pred_check
      _
    $region65: #{inception_gcn_block.1} parent=1 // pred_check_branch
      %1654 = sbr.rel (0) target = $region67
    $region66: #{inception_gcn_block.1} parent=1 // pred_region
      _
    $region67: #{inception_gcn_block.1} parent=1 // pred_fallthru
      _
    %1655 = vsyncpa [#allocation5], 1
  %1656 = vsyncmov [#allocation3]
  %s1657 = vpop.sfrf %1656
  %p1658 = scmp.eq.s32.totalorder %s1657, 0
  %p1659 = pneg %p1658
  %1661 = shalt.err (%p1659)

</llo_original>
